<compile_context>
chip_gen: v7x
topology: tpu7x:2x2x1
jax: 0.10.0
libtpu: 0.0.40
codegen_flags: <defaults>
</compile_context>

<pallas_src>
import jax
import jax.numpy as jnp
from jax.experimental import pallas as pl
from jax.experimental.pallas import tpu as pltpu


def _gaussian_masks_kernel(dis_ref, ax_ref, ay_ref, v_ref, out_ref, acc_ref):
    """One grid step processes a block of `Bt` batches.

    dis_ref : [S, S]        f32, dis[i, j] = -(shift * (j - i)^2 + bias);
                            block index is constant -> DMA'd once.
    ax_ref  : [Bt, R, C, H] atten_x_full block (natural layout)
    ay_ref  : [Bt, C, R, W] atten_y_full block (natural layout, no pre-swap)
    v_ref   : [Bt, S, S, D] value_full block   (natural layout, passed once)
    out_ref : [Bt, R, C, D]
    acc_ref : [Bt, R, C, D] f32 VMEM accumulator scratch
    """
    bt, r_dim, c_dim, h_dim = ax_ref.shape
    d_dim = v_ref.shape[-1]

    dis = dis_ref[...]          # [S, S] f32
    v = v_ref[...]              # [Bt, S, S, D]

    def _softmax_f32(s):        # numerically-stable softmax over the lane axis
        m = jnp.max(s, axis=-1, keepdims=True)
        e = jnp.exp(s - m)
        return e / jnp.sum(e, axis=-1, keepdims=True)

    # px[b, r, c, h] = softmax_h(atten_x[b, r, c, h] + dis[c, h])
    px = _softmax_f32(ax_ref[...].astype(jnp.float32) + dis[None, None, :, :])
    # py[b, c, r, w] = softmax_w(atten_y[b, c, r, w] + dis[r, w])
    py = _softmax_f32(ay_ref[...].astype(jnp.float32) + dis[None, None, :, :])

    # ---- x-path on the MXU ----------------------------------------------
    # out_x[b, r, c, d] = sum_h px[b, r, c, h] * v[b, r, h, d]
    # (b, r) are batch dims; merging them is a free major-dim reshape.
    # Operands are cast to the value dtype at the MXU boundary (no-op for
    # f32; gives bf16 MXU operands with f32 accumulation for bf16 inputs).
    px_z = px.reshape(bt * r_dim, c_dim, h_dim).astype(v.dtype)
    v_z = v.reshape(bt * r_dim, h_dim, d_dim)
    out_x = jnp.einsum("zch,zhd->zcd", px_z, v_z,
                       preferred_element_type=jnp.float32)
    acc_ref[...] = out_x.reshape(bt, r_dim, c_dim, d_dim)

    # ---- y-path on the MXU ----------------------------------------------
    # out_y[b, r, c, d] = sum_w py[b, c, r, w] * v[b, w, c, d]
    # `c` is a batch dim of this contraction but lives on the sublane axis of
    # `v`; instead of an HBM round-trip (old wrapper swapaxes copies) or an
    # unsupported in-kernel 4-D transpose, iterate `c` statically and use
    # sublane-indexed strided VMEM ref accesses, keeping the math on the MXU.
    for c in range(c_dim):
        py_c = py[:, c, :, :].astype(v.dtype)     # [Bt, R, W]  major-dim slice
        v_c = v_ref[:, :, c, :]                   # [Bt, W, D]  strided VMEM load
        oy_c = jnp.einsum("brw,bwd->brd", py_c, v_c,
                          preferred_element_type=jnp.float32)
        acc_ref[:, :, c, :] = acc_ref[:, :, c, :] + oy_c

    # TODO(synk): with D < 128 this store is lane-masked; a fully lane-dense
    # [.., C*D] slab store would need an in-kernel (C, D)->(C*D) relayout that
    # Mosaic does not express cleanly.  Keep D a multiple of 128 in production.
    out_ref[...] = acc_ref[...].astype(out_ref.dtype)


def _pick_batch_block(batch, per_batch_bytes, target_bytes=2 << 20):
    """Largest divisor of `batch` whose per-step working set stays under
    `target_bytes`, while (if possible) leaving >= 2 grid steps so both v7x
    TensorCores get work."""
    best = 1
    for bt in range(2, batch + 1):
        if batch % bt:
            continue
        if bt * per_batch_bytes > target_bytes:
            break
        if batch // bt < 2:
            continue
        best = bt
    return best


def gaussian_masks(inputs, shift, bias):
    """inputs = (x, atten_x_full, atten_y_full, value_full), like the nn.Module.

    `x` itself only fixes the spatial grid size (as in the PyTorch forward)."""
    x, atten_x_full, atten_y_full, value_full = inputs
    B, R, C, D = value_full.shape
    S = R
    assert R == C == x.shape[1] == x.shape[2], "forward requires a square grid"
    assert atten_x_full.shape == (B, S, S, S)
    assert atten_y_full.shape == (B, S, S, S)

    # Gaussian distance matrix shared by both softmaxes, computed once:
    #   dis[i, j] = -(shift * (j - i)^2 + bias)
    # serves as both dis_x[c, h] and dis_y[r, w].
    idx = jnp.arange(S, dtype=jnp.float32)
    diff = idx[None, :] - idx[:, None]
    dis = -(shift.astype(jnp.float32) * diff * diff + bias.astype(jnp.float32))

    # Batch blocking: amortize per-step overhead, but keep >= 2 steps for v7x.
    itemsize = value_full.dtype.itemsize
    per_batch_bytes = (2 * S * S * S + 2 * S * S * D) * itemsize
    bt = _pick_batch_block(B, per_batch_bytes)

    blk_dis = pl.BlockSpec((S, S), lambda b: (0, 0))
    blk_attn = pl.BlockSpec((bt, S, S, S), lambda b: (b, 0, 0, 0))
    blk_val = pl.BlockSpec((bt, S, S, D), lambda b: (b, 0, 0, 0))

    return pl.pallas_call(
        _gaussian_masks_kernel,
        out_shape=jax.ShapeDtypeStruct((B, S, S, D), value_full.dtype),
        grid=(B // bt,),
        in_specs=[blk_dis, blk_attn, blk_attn, blk_val],
        out_specs=blk_val,
        scratch_shapes=[pltpu.VMEM((bt, S, S, D), jnp.float32)],
        compiler_params=pltpu.CompilerParams(
            dimension_semantics=("parallel",),
            # Explicit, v7x-safe VMEM budget (64 MiB physical there); the
            # actual per-step working set here is only a few MiB.
            vmem_limit_bytes=48 * 1024 * 1024,
        ),
    )(dis, atten_x_full, atten_y_full, value_full)


def _reference(x, ax_full, ay_full, v_full, shift, bias):
    """Plain-JAX mirror of the PyTorch loops, for correctness checking."""
    B, R, C, D = v_full.shape
    out = jnp.zeros_like(v_full)
    hh = jnp.arange(C, dtype=jnp.float32)
    ww = jnp.arange(R, dtype=jnp.float32)
    for r in range(R):
        for c in range(C):
            dis_x = -(shift * (hh - c) ** 2 + bias)           # (C,)
            dis_y = -(shift * (ww - r) ** 2 + bias)           # (R,)
            a_x = jax.nn.softmax(dis_x + ax_full[:, r, c, :], axis=-1)   # [B, C]
            a_y = jax.nn.softmax(dis_y + ay_full[:, c, r, :], axis=-1)   # [B, R]
            val = jnp.sum(
                a_x[..., None] * v_full[:, r, :, :]
                + a_y[..., None] * v_full[:, :, c, :],
                axis=-2,
            )
            out = out.at[:, r, c, :].set(val)
    return out


if __name__ == "__main__":
    B, S, D = 2, 8, 32
    key = jax.random.PRNGKey(0)
    k1, k2, k3, k4, k5, k6 = jax.random.split(key, 6)

    x = jax.random.normal(k1, (B, S, S, D), jnp.float32)
    atten_x_full = jax.random.normal(k2, (B, S, S, S), jnp.float32)
    atten_y_full = jax.random.normal(k3, (B, S, S, S), jnp.float32)
    value_full = jax.random.normal(k4, (B, S, S, D), jnp.float32)

    # Parameters: bias = -|randn(1)|, shift = |randn(1)|  (deterministic init)
    bias = -jnp.abs(jax.random.normal(k5, (1,), jnp.float32))
    shift = jnp.abs(jax.random.normal(k6, (1,), jnp.float32))

    out = gaussian_masks((x, atten_x_full, atten_y_full, value_full), shift, bias)
    out = jax.block_until_ready(out)

    ref = _reference(x, atten_x_full, atten_y_full, value_full, shift, bias)
    assert out.shape == value_full.shape and out.dtype == value_full.dtype
    # Tolerance accounts for MXU f32 matmuls potentially running as multi-pass
    # bf16 (worst-case ~1e-2 abs for these magnitudes); real bugs show up as
    # O(1) mismatches, so this check still has teeth.
    assert jnp.allclose(out, ref, atol=2e-2, rtol=2e-2), "mismatch vs reference"

    print("KERNEL_OK")
</pallas_src>

<mosaic_0001>
module attributes {stable_mosaic.version = 11 : i64} {
  func.func @_gaussian_masks_kernel(%arg0: i32, %arg1: memref<8x8xf32, #tpu.memory_space<vmem>>, %arg2: memref<1x8x8x8xf32, #tpu.memory_space<vmem>>, %arg3: memref<1x8x8x8xf32, #tpu.memory_space<vmem>>, %arg4: memref<1x8x8x32xf32, #tpu.memory_space<vmem>>, %arg5: memref<1x8x8x32xf32, #tpu.memory_space<vmem>>, %arg6: memref<1x8x8x32xf32, #tpu.memory_space<vmem>>) attributes {dimension_semantics = [#tpu.dimension_semantics<parallel>], iteration_bounds = array<i64: 2>, scalar_prefetch = 0 : i64, scratch_operands = 1 : i64, tpu.core_type = #tpu.core_type<tc>, window_params = [{pipeline_mode = #tpu.pipeline_mode<synchronous>, transform_indices = @transform_0, window_bounds = array<i64: 8, 8>}, {transform_indices = @transform_1, window_bounds = array<i64: 1, 8, 8, 8>}, {transform_indices = @transform_2, window_bounds = array<i64: 1, 8, 8, 8>}, {transform_indices = @transform_3, window_bounds = array<i64: 1, 8, 8, 32>}, {transform_indices = @transform_4, window_bounds = array<i64: 1, 8, 8, 32>}]} {
    %c0 = arith.constant 0 : index
    %c0_0 = arith.constant 0 : index
    %0 = vector.load %arg1[%c0, %c0_0] : memref<8x8xf32, #tpu.memory_space<vmem>>, vector<8x8xf32>
    %c0_1 = arith.constant 0 : index
    %c0_2 = arith.constant 0 : index
    %c0_3 = arith.constant 0 : index
    %c0_4 = arith.constant 0 : index
    %1 = vector.load %arg4[%c0_1, %c0_2, %c0_3, %c0_4] : memref<1x8x8x32xf32, #tpu.memory_space<vmem>>, vector<1x8x8x32xf32>
    %c0_5 = arith.constant 0 : index
    %c0_6 = arith.constant 0 : index
    %c0_7 = arith.constant 0 : index
    %c0_8 = arith.constant 0 : index
    %2 = vector.load %arg2[%c0_5, %c0_6, %c0_7, %c0_8] : memref<1x8x8x8xf32, #tpu.memory_space<vmem>>, vector<1x8x8x8xf32>
    %3 = vector.shape_cast %0 : vector<8x8xf32> to vector<1x1x8x8xf32>
    %4 = vector.broadcast %3 : vector<1x1x8x8xf32> to vector<1x8x8x8xf32>
    %5 = arith.addf %2, %4 : vector<1x8x8x8xf32>
    %cst = arith.constant dense<0xFF800000> : vector<1x8x8xf32>
    %6 = vector.multi_reduction <maximumf>, %5, %cst [3] : vector<1x8x8x8xf32> to vector<1x8x8xf32>
    %7 = vector.shape_cast %6 : vector<1x8x8xf32> to vector<1x8x8x1xf32>
    %8 = vector.broadcast %7 : vector<1x8x8x1xf32> to vector<1x8x8x8xf32>
    %9 = arith.subf %5, %8 : vector<1x8x8x8xf32>
    %10 = math.exp %9 : vector<1x8x8x8xf32>
    %cst_9 = arith.constant dense<0.000000e+00> : vector<1x8x8xf32>
    %11 = vector.multi_reduction <add>, %10, %cst_9 [3] : vector<1x8x8x8xf32> to vector<1x8x8xf32>
    %12 = vector.shape_cast %11 : vector<1x8x8xf32> to vector<1x8x8x1xf32>
    %13 = vector.broadcast %12 : vector<1x8x8x1xf32> to vector<1x8x8x8xf32>
    %14 = arith.divf %10, %13 : vector<1x8x8x8xf32>
    %c0_10 = arith.constant 0 : index
    %c0_11 = arith.constant 0 : index
    %c0_12 = arith.constant 0 : index
    %c0_13 = arith.constant 0 : index
    %15 = vector.load %arg3[%c0_10, %c0_11, %c0_12, %c0_13] : memref<1x8x8x8xf32, #tpu.memory_space<vmem>>, vector<1x8x8x8xf32>
    %16 = vector.shape_cast %0 : vector<8x8xf32> to vector<1x1x8x8xf32>
    %17 = vector.broadcast %16 : vector<1x1x8x8xf32> to vector<1x8x8x8xf32>
    %18 = arith.addf %15, %17 : vector<1x8x8x8xf32>
    %cst_14 = arith.constant dense<0xFF800000> : vector<1x8x8xf32>
    %19 = vector.multi_reduction <maximumf>, %18, %cst_14 [3] : vector<1x8x8x8xf32> to vector<1x8x8xf32>
    %20 = vector.shape_cast %19 : vector<1x8x8xf32> to vector<1x8x8x1xf32>
    %21 = vector.broadcast %20 : vector<1x8x8x1xf32> to vector<1x8x8x8xf32>
    %22 = arith.subf %18, %21 : vector<1x8x8x8xf32>
    %23 = math.exp %22 : vector<1x8x8x8xf32>
    %cst_15 = arith.constant dense<0.000000e+00> : vector<1x8x8xf32>
    %24 = vector.multi_reduction <add>, %23, %cst_15 [3] : vector<1x8x8x8xf32> to vector<1x8x8xf32>
    %25 = vector.shape_cast %24 : vector<1x8x8xf32> to vector<1x8x8x1xf32>
    %26 = vector.broadcast %25 : vector<1x8x8x1xf32> to vector<1x8x8x8xf32>
    %27 = arith.divf %23, %26 : vector<1x8x8x8xf32>
    %28 = vector.shape_cast %14 : vector<1x8x8x8xf32> to vector<8x8x8xf32>
    %29 = vector.shape_cast %1 : vector<1x8x8x32xf32> to vector<8x8x32xf32>
    "tpu.trace_start"() <{level = 10 : i32, message = "zch,zhd->zcd"}> : () -> ()
    %cst_16 = arith.constant dense<0.000000e+00> : vector<8x8x32xf32>
    %30 = tpu.matmul %28, %29, %cst_16 {dimension_numbers = #tpu.dot_dimension_numbers<[2], [1], [1], [2], [0, 0, 0, 1, 1, 2], [0], [0]>} : vector<8x8x8xf32>, vector<8x8x32xf32>, vector<8x8x32xf32> -> vector<8x8x32xf32>
    "tpu.trace_stop"() : () -> ()
    %31 = vector.shape_cast %30 : vector<8x8x32xf32> to vector<1x8x8x32xf32>
    %c0_17 = arith.constant 0 : index
    %c0_18 = arith.constant 0 : index
    %c0_19 = arith.constant 0 : index
    %c0_20 = arith.constant 0 : index
    %32 = vector.load %arg6[%c0_17, %c0_18, %c0_19, %c0_20] : memref<1x8x8x32xf32, #tpu.memory_space<vmem>>, vector<1x8x8x32xf32>
    tpu.vector_store %arg6[%c0_17, %c0_18, %c0_19, %c0_20], %31 {strides = array<i32>} : memref<1x8x8x32xf32, #tpu.memory_space<vmem>>, vector<1x8x8x32xf32>,
    %33 = vector.extract_strided_slice %27 {offsets = [0, 0, 0, 0], sizes = [1, 1, 8, 8], strides = [1, 1, 1, 1]} : vector<1x8x8x8xf32> to vector<1x1x8x8xf32>
    %34 = vector.shape_cast %33 : vector<1x1x8x8xf32> to vector<1x8x8xf32>
    %c0_21 = arith.constant 0 : index
    %c0_22 = arith.constant 0 : index
    %c0_23 = arith.constant 0 : index
    %c0_24 = arith.constant 0 : index
    %35 = vector.load %arg4[%c0_21, %c0_22, %c0_23, %c0_24] : memref<1x8x8x32xf32, #tpu.memory_space<vmem>>, vector<1x8x1x32xf32>
    %36 = vector.shape_cast %35 : vector<1x8x1x32xf32> to vector<1x8x32xf32>
    "tpu.trace_start"() <{level = 10 : i32, message = "brw,bwd->brd"}> : () -> ()
    %cst_25 = arith.constant dense<0.000000e+00> : vector<1x8x32xf32>
    %37 = tpu.matmul %34, %36, %cst_25 {dimension_numbers = #tpu.dot_dimension_numbers<[2], [1], [1], [2], [0, 0, 0, 1, 1, 2], [0], [0]>} : vector<1x8x8xf32>, vector<1x8x32xf32>, vector<1x8x32xf32> -> vector<1x8x32xf32>
    "tpu.trace_stop"() : () -> ()
    %c0_26 = arith.constant 0 : index
    %c0_27 = arith.constant 0 : index
    %c0_28 = arith.constant 0 : index
    %c0_29 = arith.constant 0 : index
    %38 = vector.load %arg6[%c0_26, %c0_27, %c0_28, %c0_29] : memref<1x8x8x32xf32, #tpu.memory_space<vmem>>, vector<1x8x1x32xf32>
    %39 = vector.shape_cast %38 : vector<1x8x1x32xf32> to vector<1x8x32xf32>
    %40 = arith.addf %39, %37 : vector<1x8x32xf32>
    %c0_30 = arith.constant 0 : index
    %c0_31 = arith.constant 0 : index
    %c0_32 = arith.constant 0 : index
    %c0_33 = arith.constant 0 : index
    %41 = vector.load %arg6[%c0_30, %c0_31, %c0_32, %c0_33] : memref<1x8x8x32xf32, #tpu.memory_space<vmem>>, vector<1x8x1x32xf32>
    %42 = vector.shape_cast %41 : vector<1x8x1x32xf32> to vector<1x8x32xf32>
    %43 = vector.shape_cast %40 : vector<1x8x32xf32> to vector<1x8x1x32xf32>
    tpu.vector_store %arg6[%c0_30, %c0_31, %c0_32, %c0_33], %43 {strides = array<i32>} : memref<1x8x8x32xf32, #tpu.memory_space<vmem>>, vector<1x8x1x32xf32>,
    %44 = vector.extract_strided_slice %27 {offsets = [0, 1, 0, 0], sizes = [1, 1, 8, 8], strides = [1, 1, 1, 1]} : vector<1x8x8x8xf32> to vector<1x1x8x8xf32>
    %45 = vector.shape_cast %44 : vector<1x1x8x8xf32> to vector<1x8x8xf32>
    %c0_34 = arith.constant 0 : index
    %c0_35 = arith.constant 0 : index
    %c1 = arith.constant 1 : index
    %c0_36 = arith.constant 0 : index
    %46 = vector.load %arg4[%c0_34, %c0_35, %c1, %c0_36] : memref<1x8x8x32xf32, #tpu.memory_space<vmem>>, vector<1x8x1x32xf32>
    %47 = vector.shape_cast %46 : vector<1x8x1x32xf32> to vector<1x8x32xf32>
    "tpu.trace_start"() <{level = 10 : i32, message = "brw,bwd->brd"}> : () -> ()
    %cst_37 = arith.constant dense<0.000000e+00> : vector<1x8x32xf32>
    %48 = tpu.matmul %45, %47, %cst_37 {dimension_numbers = #tpu.dot_dimension_numbers<[2], [1], [1], [2], [0, 0, 0, 1, 1, 2], [0], [0]>} : vector<1x8x8xf32>, vector<1x8x32xf32>, vector<1x8x32xf32> -> vector<1x8x32xf32>
    "tpu.trace_stop"() : () -> ()
    %c0_38 = arith.constant 0 : index
    %c0_39 = arith.constant 0 : index
    %c1_40 = arith.constant 1 : index
    %c0_41 = arith.constant 0 : index
    %49 = vector.load %arg6[%c0_38, %c0_39, %c1_40, %c0_41] : memref<1x8x8x32xf32, #tpu.memory_space<vmem>>, vector<1x8x1x32xf32>
    %50 = vector.shape_cast %49 : vector<1x8x1x32xf32> to vector<1x8x32xf32>
    %51 = arith.addf %50, %48 : vector<1x8x32xf32>
    %c0_42 = arith.constant 0 : index
    %c0_43 = arith.constant 0 : index
    %c1_44 = arith.constant 1 : index
    %c0_45 = arith.constant 0 : index
    %52 = vector.load %arg6[%c0_42, %c0_43, %c1_44, %c0_45] : memref<1x8x8x32xf32, #tpu.memory_space<vmem>>, vector<1x8x1x32xf32>
    %53 = vector.shape_cast %52 : vector<1x8x1x32xf32> to vector<1x8x32xf32>
    %54 = vector.shape_cast %51 : vector<1x8x32xf32> to vector<1x8x1x32xf32>
    tpu.vector_store %arg6[%c0_42, %c0_43, %c1_44, %c0_45], %54 {strides = array<i32>} : memref<1x8x8x32xf32, #tpu.memory_space<vmem>>, vector<1x8x1x32xf32>,
    %55 = vector.extract_strided_slice %27 {offsets = [0, 2, 0, 0], sizes = [1, 1, 8, 8], strides = [1, 1, 1, 1]} : vector<1x8x8x8xf32> to vector<1x1x8x8xf32>
    %56 = vector.shape_cast %55 : vector<1x1x8x8xf32> to vector<1x8x8xf32>
    %c0_46 = arith.constant 0 : index
    %c0_47 = arith.constant 0 : index
    %c2 = arith.constant 2 : index
    %c0_48 = arith.constant 0 : index
    %57 = vector.load %arg4[%c0_46, %c0_47, %c2, %c0_48] : memref<1x8x8x32xf32, #tpu.memory_space<vmem>>, vector<1x8x1x32xf32>
    %58 = vector.shape_cast %57 : vector<1x8x1x32xf32> to vector<1x8x32xf32>
    "tpu.trace_start"() <{level = 10 : i32, message = "brw,bwd->brd"}> : () -> ()
    %cst_49 = arith.constant dense<0.000000e+00> : vector<1x8x32xf32>
    %59 = tpu.matmul %56, %58, %cst_49 {dimension_numbers = #tpu.dot_dimension_numbers<[2], [1], [1], [2], [0, 0, 0, 1, 1, 2], [0], [0]>} : vector<1x8x8xf32>, vector<1x8x32xf32>, vector<1x8x32xf32> -> vector<1x8x32xf32>
    "tpu.trace_stop"() : () -> ()
    %c0_50 = arith.constant 0 : index
    %c0_51 = arith.constant 0 : index
    %c2_52 = arith.constant 2 : index
    %c0_53 = arith.constant 0 : index
    %60 = vector.load %arg6[%c0_50, %c0_51, %c2_52, %c0_53] : memref<1x8x8x32xf32, #tpu.memory_space<vmem>>, vector<1x8x1x32xf32>
    %61 = vector.shape_cast %60 : vector<1x8x1x32xf32> to vector<1x8x32xf32>
    %62 = arith.addf %61, %59 : vector<1x8x32xf32>
    %c0_54 = arith.constant 0 : index
    %c0_55 = arith.constant 0 : index
    %c2_56 = arith.constant 2 : index
    %c0_57 = arith.constant 0 : index
    %63 = vector.load %arg6[%c0_54, %c0_55, %c2_56, %c0_57] : memref<1x8x8x32xf32, #tpu.memory_space<vmem>>, vector<1x8x1x32xf32>
    %64 = vector.shape_cast %63 : vector<1x8x1x32xf32> to vector<1x8x32xf32>
    %65 = vector.shape_cast %62 : vector<1x8x32xf32> to vector<1x8x1x32xf32>
    tpu.vector_store %arg6[%c0_54, %c0_55, %c2_56, %c0_57], %65 {strides = array<i32>} : memref<1x8x8x32xf32, #tpu.memory_space<vmem>>, vector<1x8x1x32xf32>,
    %66 = vector.extract_strided_slice %27 {offsets = [0, 3, 0, 0], sizes = [1, 1, 8, 8], strides = [1, 1, 1, 1]} : vector<1x8x8x8xf32> to vector<1x1x8x8xf32>
    %67 = vector.shape_cast %66 : vector<1x1x8x8xf32> to vector<1x8x8xf32>
    %c0_58 = arith.constant 0 : index
    %c0_59 = arith.constant 0 : index
    %c3 = arith.constant 3 : index
    %c0_60 = arith.constant 0 : index
    %68 = vector.load %arg4[%c0_58, %c0_59, %c3, %c0_60] : memref<1x8x8x32xf32, #tpu.memory_space<vmem>>, vector<1x8x1x32xf32>
    %69 = vector.shape_cast %68 : vector<1x8x1x32xf32> to vector<1x8x32xf32>
    "tpu.trace_start"() <{level = 10 : i32, message = "brw,bwd->brd"}> : () -> ()
    %cst_61 = arith.constant dense<0.000000e+00> : vector<1x8x32xf32>
    %70 = tpu.matmul %67, %69, %cst_61 {dimension_numbers = #tpu.dot_dimension_numbers<[2], [1], [1], [2], [0, 0, 0, 1, 1, 2], [0], [0]>} : vector<1x8x8xf32>, vector<1x8x32xf32>, vector<1x8x32xf32> -> vector<1x8x32xf32>
    "tpu.trace_stop"() : () -> ()
    %c0_62 = arith.constant 0 : index
    %c0_63 = arith.constant 0 : index
    %c3_64 = arith.constant 3 : index
    %c0_65 = arith.constant 0 : index
    %71 = vector.load %arg6[%c0_62, %c0_63, %c3_64, %c0_65] : memref<1x8x8x32xf32, #tpu.memory_space<vmem>>, vector<1x8x1x32xf32>
    %72 = vector.shape_cast %71 : vector<1x8x1x32xf32> to vector<1x8x32xf32>
    %73 = arith.addf %72, %70 : vector<1x8x32xf32>
    %c0_66 = arith.constant 0 : index
    %c0_67 = arith.constant 0 : index
    %c3_68 = arith.constant 3 : index
    %c0_69 = arith.constant 0 : index
    %74 = vector.load %arg6[%c0_66, %c0_67, %c3_68, %c0_69] : memref<1x8x8x32xf32, #tpu.memory_space<vmem>>, vector<1x8x1x32xf32>
    %75 = vector.shape_cast %74 : vector<1x8x1x32xf32> to vector<1x8x32xf32>
    %76 = vector.shape_cast %73 : vector<1x8x32xf32> to vector<1x8x1x32xf32>
    tpu.vector_store %arg6[%c0_66, %c0_67, %c3_68, %c0_69], %76 {strides = array<i32>} : memref<1x8x8x32xf32, #tpu.memory_space<vmem>>, vector<1x8x1x32xf32>,
    %77 = vector.extract_strided_slice %27 {offsets = [0, 4, 0, 0], sizes = [1, 1, 8, 8], strides = [1, 1, 1, 1]} : vector<1x8x8x8xf32> to vector<1x1x8x8xf32>
    %78 = vector.shape_cast %77 : vector<1x1x8x8xf32> to vector<1x8x8xf32>
    %c0_70 = arith.constant 0 : index
    %c0_71 = arith.constant 0 : index
    %c4 = arith.constant 4 : index
    %c0_72 = arith.constant 0 : index
    %79 = vector.load %arg4[%c0_70, %c0_71, %c4, %c0_72] : memref<1x8x8x32xf32, #tpu.memory_space<vmem>>, vector<1x8x1x32xf32>
    %80 = vector.shape_cast %79 : vector<1x8x1x32xf32> to vector<1x8x32xf32>
    "tpu.trace_start"() <{level = 10 : i32, message = "brw,bwd->brd"}> : () -> ()
    %cst_73 = arith.constant dense<0.000000e+00> : vector<1x8x32xf32>
    %81 = tpu.matmul %78, %80, %cst_73 {dimension_numbers = #tpu.dot_dimension_numbers<[2], [1], [1], [2], [0, 0, 0, 1, 1, 2], [0], [0]>} : vector<1x8x8xf32>, vector<1x8x32xf32>, vector<1x8x32xf32> -> vector<1x8x32xf32>
    "tpu.trace_stop"() : () -> ()
    %c0_74 = arith.constant 0 : index
    %c0_75 = arith.constant 0 : index
    %c4_76 = arith.constant 4 : index
    %c0_77 = arith.constant 0 : index
    %82 = vector.load %arg6[%c0_74, %c0_75, %c4_76, %c0_77] : memref<1x8x8x32xf32, #tpu.memory_space<vmem>>, vector<1x8x1x32xf32>
    %83 = vector.shape_cast %82 : vector<1x8x1x32xf32> to vector<1x8x32xf32>
    %84 = arith.addf %83, %81 : vector<1x8x32xf32>
    %c0_78 = arith.constant 0 : index
    %c0_79 = arith.constant 0 : index
    %c4_80 = arith.constant 4 : index
    %c0_81 = arith.constant 0 : index
    %85 = vector.load %arg6[%c0_78, %c0_79, %c4_80, %c0_81] : memref<1x8x8x32xf32, #tpu.memory_space<vmem>>, vector<1x8x1x32xf32>
    %86 = vector.shape_cast %85 : vector<1x8x1x32xf32> to vector<1x8x32xf32>
    %87 = vector.shape_cast %84 : vector<1x8x32xf32> to vector<1x8x1x32xf32>
    tpu.vector_store %arg6[%c0_78, %c0_79, %c4_80, %c0_81], %87 {strides = array<i32>} : memref<1x8x8x32xf32, #tpu.memory_space<vmem>>, vector<1x8x1x32xf32>,
    %88 = vector.extract_strided_slice %27 {offsets = [0, 5, 0, 0], sizes = [1, 1, 8, 8], strides = [1, 1, 1, 1]} : vector<1x8x8x8xf32> to vector<1x1x8x8xf32>
    %89 = vector.shape_cast %88 : vector<1x1x8x8xf32> to vector<1x8x8xf32>
    %c0_82 = arith.constant 0 : index
    %c0_83 = arith.constant 0 : index
    %c5 = arith.constant 5 : index
    %c0_84 = arith.constant 0 : index
    %90 = vector.load %arg4[%c0_82, %c0_83, %c5, %c0_84] : memref<1x8x8x32xf32, #tpu.memory_space<vmem>>, vector<1x8x1x32xf32>
    %91 = vector.shape_cast %90 : vector<1x8x1x32xf32> to vector<1x8x32xf32>
    "tpu.trace_start"() <{level = 10 : i32, message = "brw,bwd->brd"}> : () -> ()
    %cst_85 = arith.constant dense<0.000000e+00> : vector<1x8x32xf32>
    %92 = tpu.matmul %89, %91, %cst_85 {dimension_numbers = #tpu.dot_dimension_numbers<[2], [1], [1], [2], [0, 0, 0, 1, 1, 2], [0], [0]>} : vector<1x8x8xf32>, vector<1x8x32xf32>, vector<1x8x32xf32> -> vector<1x8x32xf32>
    "tpu.trace_stop"() : () -> ()
    %c0_86 = arith.constant 0 : index
    %c0_87 = arith.constant 0 : index
    %c5_88 = arith.constant 5 : index
    %c0_89 = arith.constant 0 : index
    %93 = vector.load %arg6[%c0_86, %c0_87, %c5_88, %c0_89] : memref<1x8x8x32xf32, #tpu.memory_space<vmem>>, vector<1x8x1x32xf32>
    %94 = vector.shape_cast %93 : vector<1x8x1x32xf32> to vector<1x8x32xf32>
    %95 = arith.addf %94, %92 : vector<1x8x32xf32>
    %c0_90 = arith.constant 0 : index
    %c0_91 = arith.constant 0 : index
    %c5_92 = arith.constant 5 : index
    %c0_93 = arith.constant 0 : index
    %96 = vector.load %arg6[%c0_90, %c0_91, %c5_92, %c0_93] : memref<1x8x8x32xf32, #tpu.memory_space<vmem>>, vector<1x8x1x32xf32>
    %97 = vector.shape_cast %96 : vector<1x8x1x32xf32> to vector<1x8x32xf32>
    %98 = vector.shape_cast %95 : vector<1x8x32xf32> to vector<1x8x1x32xf32>
    tpu.vector_store %arg6[%c0_90, %c0_91, %c5_92, %c0_93], %98 {strides = array<i32>} : memref<1x8x8x32xf32, #tpu.memory_space<vmem>>, vector<1x8x1x32xf32>,
    %99 = vector.extract_strided_slice %27 {offsets = [0, 6, 0, 0], sizes = [1, 1, 8, 8], strides = [1, 1, 1, 1]} : vector<1x8x8x8xf32> to vector<1x1x8x8xf32>
    %100 = vector.shape_cast %99 : vector<1x1x8x8xf32> to vector<1x8x8xf32>
    %c0_94 = arith.constant 0 : index
    %c0_95 = arith.constant 0 : index
    %c6 = arith.constant 6 : index
    %c0_96 = arith.constant 0 : index
    %101 = vector.load %arg4[%c0_94, %c0_95, %c6, %c0_96] : memref<1x8x8x32xf32, #tpu.memory_space<vmem>>, vector<1x8x1x32xf32>
    %102 = vector.shape_cast %101 : vector<1x8x1x32xf32> to vector<1x8x32xf32>
    "tpu.trace_start"() <{level = 10 : i32, message = "brw,bwd->brd"}> : () -> ()
    %cst_97 = arith.constant dense<0.000000e+00> : vector<1x8x32xf32>
    %103 = tpu.matmul %100, %102, %cst_97 {dimension_numbers = #tpu.dot_dimension_numbers<[2], [1], [1], [2], [0, 0, 0, 1, 1, 2], [0], [0]>} : vector<1x8x8xf32>, vector<1x8x32xf32>, vector<1x8x32xf32> -> vector<1x8x32xf32>
    "tpu.trace_stop"() : () -> ()
    %c0_98 = arith.constant 0 : index
    %c0_99 = arith.constant 0 : index
    %c6_100 = arith.constant 6 : index
    %c0_101 = arith.constant 0 : index
    %104 = vector.load %arg6[%c0_98, %c0_99, %c6_100, %c0_101] : memref<1x8x8x32xf32, #tpu.memory_space<vmem>>, vector<1x8x1x32xf32>
    %105 = vector.shape_cast %104 : vector<1x8x1x32xf32> to vector<1x8x32xf32>
    %106 = arith.addf %105, %103 : vector<1x8x32xf32>
    %c0_102 = arith.constant 0 : index
    %c0_103 = arith.constant 0 : index
    %c6_104 = arith.constant 6 : index
    %c0_105 = arith.constant 0 : index
    %107 = vector.load %arg6[%c0_102, %c0_103, %c6_104, %c0_105] : memref<1x8x8x32xf32, #tpu.memory_space<vmem>>, vector<1x8x1x32xf32>
    %108 = vector.shape_cast %107 : vector<1x8x1x32xf32> to vector<1x8x32xf32>
    %109 = vector.shape_cast %106 : vector<1x8x32xf32> to vector<1x8x1x32xf32>
    tpu.vector_store %arg6[%c0_102, %c0_103, %c6_104, %c0_105], %109 {strides = array<i32>} : memref<1x8x8x32xf32, #tpu.memory_space<vmem>>, vector<1x8x1x32xf32>,
    %110 = vector.extract_strided_slice %27 {offsets = [0, 7, 0, 0], sizes = [1, 1, 8, 8], strides = [1, 1, 1, 1]} : vector<1x8x8x8xf32> to vector<1x1x8x8xf32>
    %111 = vector.shape_cast %110 : vector<1x1x8x8xf32> to vector<1x8x8xf32>
    %c0_106 = arith.constant 0 : index
    %c0_107 = arith.constant 0 : index
    %c7 = arith.constant 7 : index
    %c0_108 = arith.constant 0 : index
    %112 = vector.load %arg4[%c0_106, %c0_107, %c7, %c0_108] : memref<1x8x8x32xf32, #tpu.memory_space<vmem>>, vector<1x8x1x32xf32>
    %113 = vector.shape_cast %112 : vector<1x8x1x32xf32> to vector<1x8x32xf32>
    "tpu.trace_start"() <{level = 10 : i32, message = "brw,bwd->brd"}> : () -> ()
    %cst_109 = arith.constant dense<0.000000e+00> : vector<1x8x32xf32>
    %114 = tpu.matmul %111, %113, %cst_109 {dimension_numbers = #tpu.dot_dimension_numbers<[2], [1], [1], [2], [0, 0, 0, 1, 1, 2], [0], [0]>} : vector<1x8x8xf32>, vector<1x8x32xf32>, vector<1x8x32xf32> -> vector<1x8x32xf32>
    "tpu.trace_stop"() : () -> ()
    %c0_110 = arith.constant 0 : index
    %c0_111 = arith.constant 0 : index
    %c7_112 = arith.constant 7 : index
    %c0_113 = arith.constant 0 : index
    %115 = vector.load %arg6[%c0_110, %c0_111, %c7_112, %c0_113] : memref<1x8x8x32xf32, #tpu.memory_space<vmem>>, vector<1x8x1x32xf32>
    %116 = vector.shape_cast %115 : vector<1x8x1x32xf32> to vector<1x8x32xf32>
    %117 = arith.addf %116, %114 : vector<1x8x32xf32>
    %c0_114 = arith.constant 0 : index
    %c0_115 = arith.constant 0 : index
    %c7_116 = arith.constant 7 : index
    %c0_117 = arith.constant 0 : index
    %118 = vector.load %arg6[%c0_114, %c0_115, %c7_116, %c0_117] : memref<1x8x8x32xf32, #tpu.memory_space<vmem>>, vector<1x8x1x32xf32>
    %119 = vector.shape_cast %118 : vector<1x8x1x32xf32> to vector<1x8x32xf32>
    %120 = vector.shape_cast %117 : vector<1x8x32xf32> to vector<1x8x1x32xf32>
    tpu.vector_store %arg6[%c0_114, %c0_115, %c7_116, %c0_117], %120 {strides = array<i32>} : memref<1x8x8x32xf32, #tpu.memory_space<vmem>>, vector<1x8x1x32xf32>,
    %c0_118 = arith.constant 0 : index
    %c0_119 = arith.constant 0 : index
    %c0_120 = arith.constant 0 : index
    %c0_121 = arith.constant 0 : index
    %121 = vector.load %arg6[%c0_118, %c0_119, %c0_120, %c0_121] : memref<1x8x8x32xf32, #tpu.memory_space<vmem>>, vector<1x8x8x32xf32>
    %c0_122 = arith.constant 0 : index
    %c0_123 = arith.constant 0 : index
    %c0_124 = arith.constant 0 : index
    %c0_125 = arith.constant 0 : index
    %122 = vector.load %arg5[%c0_122, %c0_123, %c0_124, %c0_125] : memref<1x8x8x32xf32, #tpu.memory_space<vmem>>, vector<1x8x8x32xf32>
    tpu.vector_store %arg5[%c0_122, %c0_123, %c0_124, %c0_125], %121 {strides = array<i32>} : memref<1x8x8x32xf32, #tpu.memory_space<vmem>>, vector<1x8x8x32xf32>,
    return
  }
  func.func @transform_0(%arg0: i32) -> (i32, i32) {
    %c0_i32 = arith.constant 0 : i32
    %c0_i32_0 = arith.constant 0 : i32
    %c0_i32_1 = arith.constant 0 : i32
    return %c0_i32, %c0_i32_0 : i32, i32
  }
  func.func @transform_1(%arg0: i32) -> (i32, i32, i32, i32) {
    %c0_i32 = arith.constant 0 : i32
    %c0_i32_0 = arith.constant 0 : i32
    %c0_i32_1 = arith.constant 0 : i32
    %c0_i32_2 = arith.constant 0 : i32
    return %arg0, %c0_i32, %c0_i32_0, %c0_i32_1 : i32, i32, i32, i32
  }
  func.func @transform_2(%arg0: i32) -> (i32, i32, i32, i32) {
    %c0_i32 = arith.constant 0 : i32
    %c0_i32_0 = arith.constant 0 : i32
    %c0_i32_1 = arith.constant 0 : i32
    %c0_i32_2 = arith.constant 0 : i32
    return %arg0, %c0_i32, %c0_i32_0, %c0_i32_1 : i32, i32, i32, i32
  }
  func.func @transform_3(%arg0: i32) -> (i32, i32, i32, i32) {
    %c0_i32 = arith.constant 0 : i32
    %c0_i32_0 = arith.constant 0 : i32
    %c0_i32_1 = arith.constant 0 : i32
    %c0_i32_2 = arith.constant 0 : i32
    return %arg0, %c0_i32, %c0_i32_0, %c0_i32_1 : i32, i32, i32, i32
  }
  func.func @transform_4(%arg0: i32) -> (i32, i32, i32, i32) {
    %c0_i32 = arith.constant 0 : i32
    %c0_i32_0 = arith.constant 0 : i32
    %c0_i32_1 = arith.constant 0 : i32
    %c0_i32_2 = arith.constant 0 : i32
    return %arg0, %c0_i32, %c0_i32_0, %c0_i32_1 : i32, i32, i32, i32
  }
}

</mosaic_0001>

<llo_original>
// kernel: tpu_custom_call.1
$region0: #{tpu_custom_call.1}
  #allocation0 [shape = 'u32[]', space=smem, size = 0x4, offset = 0x4, fixed_abs, tag = 'smem constant byte address 0x4 - core index']
  #allocation1 [shape = 'u32[144,128]{1,0:T(1,128)}', space=vmem, size = 0x12000, scoped, tag = 'internal scratch']
  #allocation2 [shape = 'f32[1,8,8,32]{3,2,1,0:T(8,128)}', space=vmem, size = 0x8000, scoped, tag = 'scratch operand']
  %s0 = inlined_call_operand.hbm [shape: f32[8,8], index: 0, kind: input, shape index: {}]
  %s1 = inlined_call_operand.hbm [shape: f32[2,8,8,8], index: 1, kind: input, shape index: {}]
  %s2 = inlined_call_operand.hbm [shape: f32[2,8,8,8], index: 2, kind: input, shape index: {}]
  %s3 = inlined_call_operand.hbm [shape: f32[2,8,8,32], index: 3, kind: input, shape index: {}]
  %s4 = inlined_call_operand.hbm [shape: f32[2,8,8,32], index: 4, kind: output, shape index: {}]
  %s5 = sld [smem:[#allocation0]]
  $region65: #{tpu_custom_call.1} parent=0
    _
  %s7 = ssub.s32 1, %s5
  %s8 = scalar_select 0, %s7, %s5
  $region1: #{tpu_custom_call.1} parent=0
    #allocation3 [shape = 'u8[4096]{0}', space=vmem, size = 0x1000, scoped, tag = 'input window, operand 0, single buffered']
    #allocation4 [shape = 's32[2]{0}', space=sflag, size = 0x8, scoped, tag = 'scoped memory for tpu_custom_call.1']
    #allocation5 [shape = 's32[2]{0}', space=sflag, size = 0x8, scoped, tag = 'scoped memory for tpu_custom_call.1']
    #allocation6 [shape = 'u8[65536]{0}', space=vmem, size = 0x10000, scoped, tag = 'input window, operand 1']
    #allocation7 [shape = 's32[2]{0}', space=sflag, size = 0x8, scoped, tag = 'scoped memory for tpu_custom_call.1']
    #allocation8 [shape = 'u8[65536]{0}', space=vmem, size = 0x10000, scoped, tag = 'input window, operand 2']
    #allocation9 [shape = 'u8[65536]{0}', space=vmem, size = 0x10000, scoped, tag = 'input window, operand 3']
    #allocation10 [shape = 's32[2]{0}', space=sflag, size = 0x8, scoped, tag = 'scoped memory for tpu_custom_call.1']
    #allocation11 [shape = 'u8[65536]{0}', space=vmem, size = 0x10000, scoped, tag = 'output window, operand 0']
    %9 = vsyncpa [#allocation4], 0
    %10 = vsyncpa [#allocation7], 0
    %s11 = scalar_lea.sflag [#allocation7], 1
    %12 = vsyncpa %s11, 0
    %13 = vsyncpa [#allocation10], 0
    %s14 = scalar_lea.sflag [#allocation10], 1
    %15 = vsyncpa %s14, 0
    %16 = vsyncpa [#allocation5], 0
    %s17 = scalar_lea.sflag [#allocation5], 1
    %18 = vsyncpa %s17, 0
    loop: start=0, step=1, limit=4
    $region2: #{tpu_custom_call.1} parent=1 // loop_pre_header
      _
    $region3: #{tpu_custom_call.1} parent=1 // loop_header
      %s20 = sphi 0, %s24
      %p21 = scmp.ge.s32.totalorder %s20, 4
      %s28 = sphi 0, %s28
      %s30 = sphi 0, %s28
      %s31 = sphi 0, %s30
      %s45 = sphi 0, %s31
      %s51 = sphi 0, %s53
      %s54 = sphi 0, %s51
      %s55 = sphi 0, %s54
      %s71 = sphi 0, %s55
      %s77 = sphi 0, %s79
      %s80 = sphi 0, %s77
      %s81 = sphi 0, %s80
      %s97 = sphi 0, %s81
      %s103 = sphi 0, %s105
      %s106 = sphi 0, %s103
      %s107 = sphi 0, %s106
      %s123 = sphi 0, %s107
      %s129 = sphi 0, %s131
      %s132 = sphi 0, %s129
      %s133 = sphi 0, %s132
      %s149 = sphi 0, %s133
    $region4: #{tpu_custom_call.1} parent=1 // loop_header_branch
      %23 = sbr.rel (%p21) target = $region8
    $region5: #{tpu_custom_call.1} parent=1 // loop_body
      %s25 = ssub.s32 %s20, 1
      %s26 = ssub.s32 %s20, 2
      %s27 = sadd.s32 %s20, 1
      %s29 = sadd.s32 %s28, 1
      %p32 = scmp.eq.s32.totalorder %s20, 1
      %p33 = scmp.ne.s32.totalorder %s28, %s30
      %p34 = scmp.eq.s32.totalorder %s20, 0
      %p35 = por %p33, %p34
      %p36 = scmp.ne.s32.totalorder %s28, %s30
      %p37 = scmp.eq.s32.totalorder %s25, 1
      %p38 = por %p36, %p37
      %p39 = scmp.ne.s32.totalorder %s30, %s31
      %p40 = scmp.eq.s32.totalorder %s25, 0
      %p41 = por %p39, %p40
      %p42 = scmp.ne.s32.totalorder %s30, %s31
      %p43 = scmp.eq.s32.totalorder %s26, 1
      %p44 = por %p42, %p43
      %p46 = scmp.ne.s32.totalorder %s31, %s45
      %p47 = scmp.eq.s32.totalorder %s26, 0
      %p48 = por %p46, %p47
      %s49 = ssub.s32 %s20, %s27
      %p50 = scmp.eq.s32.totalorder %s49, 0
      %s52 = sadd.s32 %s51, 1
      %s53 = scalar_select %p50, %s51, %s52
      %p56 = pneg %p50
      %p57 = scmp.eq.s32.totalorder %s20, 1
      %p58 = por %p56, %p57
      %p59 = scmp.ne.s32.totalorder %s51, %s54
      %p60 = scmp.eq.s32.totalorder %s20, 0
      %p61 = por %p59, %p60
      %p62 = scmp.ne.s32.totalorder %s51, %s54
      %p63 = scmp.eq.s32.totalorder %s25, 1
      %p64 = por %p62, %p63
      %p65 = scmp.ne.s32.totalorder %s54, %s55
      %p66 = scmp.eq.s32.totalorder %s25, 0
      %p67 = por %p65, %p66
      %p68 = scmp.ne.s32.totalorder %s54, %s55
      %p69 = scmp.eq.s32.totalorder %s26, 1
      %p70 = por %p68, %p69
      %p72 = scmp.ne.s32.totalorder %s55, %s71
      %p73 = scmp.eq.s32.totalorder %s26, 0
      %p74 = por %p72, %p73
      %s75 = ssub.s32 %s20, %s27
      %p76 = scmp.eq.s32.totalorder %s75, 0
      %s78 = sadd.s32 %s77, 1
      %s79 = scalar_select %p76, %s77, %s78
      %p82 = pneg %p76
      %p83 = scmp.eq.s32.totalorder %s20, 1
      %p84 = por %p82, %p83
      %p85 = scmp.ne.s32.totalorder %s77, %s80
      %p86 = scmp.eq.s32.totalorder %s20, 0
      %p87 = por %p85, %p86
      %p88 = scmp.ne.s32.totalorder %s77, %s80
      %p89 = scmp.eq.s32.totalorder %s25, 1
      %p90 = por %p88, %p89
      %p91 = scmp.ne.s32.totalorder %s80, %s81
      %p92 = scmp.eq.s32.totalorder %s25, 0
      %p93 = por %p91, %p92
      %p94 = scmp.ne.s32.totalorder %s80, %s81
      %p95 = scmp.eq.s32.totalorder %s26, 1
      %p96 = por %p94, %p95
      %p98 = scmp.ne.s32.totalorder %s81, %s97
      %p99 = scmp.eq.s32.totalorder %s26, 0
      %p100 = por %p98, %p99
      %s101 = ssub.s32 %s20, %s27
      %p102 = scmp.eq.s32.totalorder %s101, 0
      %s104 = sadd.s32 %s103, 1
      %s105 = scalar_select %p102, %s103, %s104
      %p108 = pneg %p102
      %p109 = scmp.eq.s32.totalorder %s20, 1
      %p110 = por %p108, %p109
      %p111 = scmp.ne.s32.totalorder %s103, %s106
      %p112 = scmp.eq.s32.totalorder %s20, 0
      %p113 = por %p111, %p112
      %p114 = scmp.ne.s32.totalorder %s103, %s106
      %p115 = scmp.eq.s32.totalorder %s25, 1
      %p116 = por %p114, %p115
      %p117 = scmp.ne.s32.totalorder %s106, %s107
      %p118 = scmp.eq.s32.totalorder %s25, 0
      %p119 = por %p117, %p118
      %p120 = scmp.ne.s32.totalorder %s106, %s107
      %p121 = scmp.eq.s32.totalorder %s26, 1
      %p122 = por %p120, %p121
      %p124 = scmp.ne.s32.totalorder %s107, %s123
      %p125 = scmp.eq.s32.totalorder %s26, 0
      %p126 = por %p124, %p125
      %s127 = ssub.s32 %s20, %s27
      %p128 = scmp.eq.s32.totalorder %s127, 0
      %s130 = sadd.s32 %s129, 1
      %s131 = scalar_select %p128, %s129, %s130
      %p134 = pneg %p128
      %p135 = scmp.eq.s32.totalorder %s20, 1
      %p136 = por %p134, %p135
      %p137 = scmp.ne.s32.totalorder %s129, %s132
      %p138 = scmp.eq.s32.totalorder %s20, 0
      %p139 = por %p137, %p138
      %p140 = scmp.ne.s32.totalorder %s129, %s132
      %p141 = scmp.eq.s32.totalorder %s25, 1
      %p142 = por %p140, %p141
      %p143 = scmp.ne.s32.totalorder %s132, %s133
      %p144 = scmp.eq.s32.totalorder %s25, 0
      %p145 = por %p143, %p144
      %p146 = scmp.ne.s32.totalorder %s132, %s133
      %p147 = scmp.eq.s32.totalorder %s26, 1
      %p148 = por %p146, %p147
      %p150 = scmp.ne.s32.totalorder %s133, %s149
      %p151 = scmp.eq.s32.totalorder %s26, 0
      %p152 = por %p150, %p151
      %p153 = scmp.le.s32.totalorder 1, %s20
      %p154 = scmp.lt.s32.totalorder %s20, 3
      %p155 = pnand %p153, %p154
      %p156 = pneg %p155
      // Predicated region
      $region9: #{tpu_custom_call.1} parent=5 // pred_check
        _
      $region10: #{tpu_custom_call.1} parent=5 // pred_check_branch
        %158 = sbr.rel (%p155) target = $region12
      $region11: #{tpu_custom_call.1} parent=5 // pred_region
        %s159 = ssub.s32 %s20, 1
        // Predicated region
        $region13: #{tpu_custom_call.1} parent=11 // pred_check
          %p160 = pneg %p41
        $region14: #{tpu_custom_call.1} parent=11 // pred_check_branch
          %162 = sbr.rel (%p160) target = $region16
        $region15: #{tpu_custom_call.1} parent=11 // pred_region
          %s164 = ssub.s32 128, 128
          %165 = vsyncadd [#allocation4], %s164
          %s167 = sshll.u32 [#allocation3], 4
          %s168 = int_to_ptr.vmem [resolvable:$true] %s167
          %170 = dma.hbm_to_vmem [thread:$0]  %s0, 128, %s168, [#allocation4]
        $region16: #{tpu_custom_call.1} parent=11 // pred_fallthru
          _
      $region12: #{tpu_custom_call.1} parent=5 // pred_fallthru
        _
      %p171 = scmp.lt.s32.totalorder %s20, 2
      // Predicated region
      $region17: #{tpu_custom_call.1} parent=5 // pred_check
        %p172 = pneg %p171
      $region18: #{tpu_custom_call.1} parent=5 // pred_check_branch
        %174 = sbr.rel (%p172) target = $region20
      $region19: #{tpu_custom_call.1} parent=5 // pred_region
        // Predicated region
        $region21: #{tpu_custom_call.1} parent=19 // pred_check
          %p175 = pneg %p61
        $region22: #{tpu_custom_call.1} parent=19 // pred_check_branch
          %177 = sbr.rel (%p175) target = $region24
        $region23: #{tpu_custom_call.1} parent=19 // pred_region
          %s178 = sand.u32 %s20, 1
          %s179 = scalar_lea.sflag [#allocation7], %s178
          %s180 = sand.u32 %s51, 1
          %s181 = smul.addr %s180, 64
          %s182 = scalar_lea.vmem [#allocation6], %s181
          %s184 = ssub.s32 1024, 1024
          %185 = vsyncadd %s179, %s184
          %s186 = smul.addr %s20, 8
          %s187 = smul.addr %s186, 128
          %s188 = scalar_lea.hbm %s1, %s187
          %s189 = sshll.u32 %s182, 4
          %s190 = int_to_ptr.vmem [resolvable:$true] %s189
          %195 = dma.hbm_to_vmem [thread:$0]  %s188, 1024, %s190, %s179, 128, 128, 8
        $region24: #{tpu_custom_call.1} parent=19 // pred_fallthru
          _
        // Predicated region
        $region25: #{tpu_custom_call.1} parent=19 // pred_check
          %p196 = pneg %p87
        $region26: #{tpu_custom_call.1} parent=19 // pred_check_branch
          %198 = sbr.rel (%p196) target = $region28
        $region27: #{tpu_custom_call.1} parent=19 // pred_region
          %s199 = sand.u32 %s20, 1
          %s200 = scalar_lea.sflag [#allocation7], %s199
          %s201 = sand.u32 %s77, 1
          %s202 = smul.addr %s201, 64
          %s203 = scalar_lea.vmem [#allocation8], %s202
          %s205 = ssub.s32 1024, 1024
          %206 = vsyncadd %s200, %s205
          %s207 = smul.addr %s20, 8
          %s208 = smul.addr %s207, 128
          %s209 = scalar_lea.hbm %s2, %s208
          %s210 = sshll.u32 %s203, 4
          %s211 = int_to_ptr.vmem [resolvable:$true] %s210
          %216 = dma.hbm_to_vmem [thread:$0]  %s209, 1024, %s211, %s200, 128, 128, 8
        $region28: #{tpu_custom_call.1} parent=19 // pred_fallthru
          _
        // Predicated region
        $region29: #{tpu_custom_call.1} parent=19 // pred_check
          %p217 = pneg %p113
        $region30: #{tpu_custom_call.1} parent=19 // pred_check_branch
          %219 = sbr.rel (%p217) target = $region32
        $region31: #{tpu_custom_call.1} parent=19 // pred_region
          %s220 = sand.u32 %s103, 1
          %s221 = scalar_lea.sflag [#allocation10], %s220
          %s222 = sand.u32 %s103, 1
          %s223 = smul.addr %s222, 64
          %s224 = scalar_lea.vmem [#allocation9], %s223
          %s226 = ssub.s32 1024, 1024
          %227 = vsyncadd %s221, %s226
          %s228 = smul.addr %s20, 8
          %s229 = smul.addr %s228, 128
          %s230 = scalar_lea.hbm %s3, %s229
          %s231 = sshll.u32 %s224, 4
          %s232 = int_to_ptr.vmem [resolvable:$true] %s231
          %237 = dma.hbm_to_vmem [thread:$0]  %s230, 1024, %s232, %s221, 128, 128, 8
        $region32: #{tpu_custom_call.1} parent=19 // pred_fallthru
          _
      $region20: #{tpu_custom_call.1} parent=5 // pred_fallthru
        _
      %p238 = scmp.le.s32.totalorder 1, %s20
      %p239 = scmp.lt.s32.totalorder %s20, 3
      %p240 = pnand %p238, %p239
      %p241 = pneg %p240
      // Predicated region
      $region33: #{tpu_custom_call.1} parent=5 // pred_check
        _
      $region34: #{tpu_custom_call.1} parent=5 // pred_check_branch
        %243 = sbr.rel (%p240) target = $region36
      $region35: #{tpu_custom_call.1} parent=5 // pred_region
        %s244 = ssub.s32 %s20, 1
        // Predicated region
        $region37: #{tpu_custom_call.1} parent=35 // pred_check
          %p245 = pneg %p41
        $region38: #{tpu_custom_call.1} parent=35 // pred_check_branch
          %247 = sbr.rel (%p245) target = $region40
        $region39: #{tpu_custom_call.1} parent=35 // pred_region
          %248 = dma.done [#allocation4], 128
        $region40: #{tpu_custom_call.1} parent=35 // pred_fallthru
          _
        %s249 = sand.u32 %s25, 1
        %s250 = scalar_lea.sflag [#allocation7], %s249
        %s251 = sand.u32 %s54, 1
        %s252 = smul.addr %s251, 64
        %s253 = scalar_lea.vmem [#allocation6], %s252
        // Predicated region
        $region41: #{tpu_custom_call.1} parent=35 // pred_check
          %p254 = pneg %p67
        $region42: #{tpu_custom_call.1} parent=35 // pred_check_branch
          %256 = sbr.rel (%p254) target = $region44
        $region43: #{tpu_custom_call.1} parent=35 // pred_region
          %257 = dma.done %s250, 1024
        $region44: #{tpu_custom_call.1} parent=35 // pred_fallthru
          _
        %s258 = sand.u32 %s25, 1
        %s259 = scalar_lea.sflag [#allocation7], %s258
        %s260 = sand.u32 %s80, 1
        %s261 = smul.addr %s260, 64
        %s262 = scalar_lea.vmem [#allocation8], %s261
        // Predicated region
        $region45: #{tpu_custom_call.1} parent=35 // pred_check
          %p263 = pneg %p93
        $region46: #{tpu_custom_call.1} parent=35 // pred_check_branch
          %265 = sbr.rel (%p263) target = $region48
        $region47: #{tpu_custom_call.1} parent=35 // pred_region
          %266 = dma.done %s259, 1024
        $region48: #{tpu_custom_call.1} parent=35 // pred_fallthru
          _
        %s267 = sand.u32 %s106, 1
        %s268 = scalar_lea.sflag [#allocation10], %s267
        %s269 = sand.u32 %s106, 1
        %s270 = smul.addr %s269, 64
        %s271 = scalar_lea.vmem [#allocation9], %s270
        // Predicated region
        $region49: #{tpu_custom_call.1} parent=35 // pred_check
          %p272 = pneg %p119
        $region50: #{tpu_custom_call.1} parent=35 // pred_check_branch
          %274 = sbr.rel (%p272) target = $region52
        $region51: #{tpu_custom_call.1} parent=35 // pred_region
          %275 = dma.done %s268, 1024
        $region52: #{tpu_custom_call.1} parent=35 // pred_fallthru
          _
        %p276 = pneg %p41
        %p277 = pneg %p38
        %s278 = sand.u32 %s25, 1
        %s279 = scalar_lea.sflag [#allocation7], %s278
        %s280 = sand.u32 %s54, 1
        %s281 = smul.addr %s280, 64
        %s282 = scalar_lea.vmem [#allocation6], %s281
        %p283 = pneg %p67
        %p284 = pneg %p64
        %s285 = sand.u32 %s25, 1
        %s286 = scalar_lea.sflag [#allocation7], %s285
        %s287 = sand.u32 %s80, 1
        %s288 = smul.addr %s287, 64
        %s289 = scalar_lea.vmem [#allocation8], %s288
        %p290 = pneg %p93
        %p291 = pneg %p90
        %s292 = sand.u32 %s106, 1
        %s293 = scalar_lea.sflag [#allocation10], %s292
        %s294 = sand.u32 %s106, 1
        %s295 = smul.addr %s294, 64
        %s296 = scalar_lea.vmem [#allocation9], %s295
        %p297 = pneg %p119
        %p298 = pneg %p116
        %p299 = pneg %p145
        %p300 = pneg %p142
        %s301 = sand.u32 %s132, 1
        %s302 = scalar_lea.sflag [#allocation5], %s301
        %s303 = sand.u32 %s132, 1
        %s304 = smul.addr %s303, 64
        %s305 = scalar_lea.vmem [#allocation11], %s304
        %v306 = vld [vmem:[#allocation3] sm:$0xff]
        %v307 = vld [vmem:[%s271] sm:$0xff]
        %v308 = vld [vmem:[%s271 + $0x8] sm:$0xff]
        %v309 = vld [vmem:[%s271 + $0x10] sm:$0xff]
        %v310 = vld [vmem:[%s271 + $0x18] sm:$0xff]
        %v311 = vld [vmem:[%s271 + $0x20] sm:$0xff]
        %v312 = vld [vmem:[%s271 + $0x28] sm:$0xff]
        %v313 = vld [vmem:[%s271 + $0x30] sm:$0xff]
        %v314 = vld [vmem:[%s271 + $0x38] sm:$0xff]
        %v315 = vld [vmem:[%s253] sm:$0xff]
        %v316 = vld [vmem:[%s253 + $0x8] sm:$0xff]
        %v317 = vld [vmem:[%s253 + $0x10] sm:$0xff]
        %v318 = vld [vmem:[%s253 + $0x18] sm:$0xff]
        %v319 = vld [vmem:[%s253 + $0x20] sm:$0xff]
        %v320 = vld [vmem:[%s253 + $0x28] sm:$0xff]
        %v321 = vld [vmem:[%s253 + $0x30] sm:$0xff]
        %v322 = vld [vmem:[%s253 + $0x38] sm:$0xff]
        %v323 = vadd.f32 %v315, %v306
        %v324 = vadd.f32 %v316, %v306
        %v325 = vadd.f32 %v317, %v306
        %v326 = vadd.f32 %v318, %v306
        %v327 = vadd.f32 %v319, %v306
        %v328 = vadd.f32 %v320, %v306
        %v329 = vadd.f32 %v321, %v306
        %v330 = vadd.f32 %v322, %v306
        %vm331 = vcmask 64512
        %v332 = vsel %vm331, %v323, -inf
        %333 = vmax.xlane.f32.xlu0 %v332
        %v334 = vpop.xlane.xlu0 %333
        %v335 = vsel %vm331, %v324, -inf
        %336 = vmax.xlane.f32.xlu0 %v335
        %v337 = vpop.xlane.xlu0 %336
        %v338 = vsel %vm331, %v325, -inf
        %339 = vmax.xlane.f32.xlu0 %v338
        %v340 = vpop.xlane.xlu0 %339
        %v341 = vsel %vm331, %v326, -inf
        %342 = vmax.xlane.f32.xlu0 %v341
        %v343 = vpop.xlane.xlu0 %342
        %v344 = vsel %vm331, %v327, -inf
        %345 = vmax.xlane.f32.xlu0 %v344
        %v346 = vpop.xlane.xlu0 %345
        %v347 = vsel %vm331, %v328, -inf
        %348 = vmax.xlane.f32.xlu0 %v347
        %v349 = vpop.xlane.xlu0 %348
        %v350 = vsel %vm331, %v329, -inf
        %351 = vmax.xlane.f32.xlu0 %v350
        %v352 = vpop.xlane.xlu0 %351
        %v353 = vsel %vm331, %v330, -inf
        %354 = vmax.xlane.f32.xlu0 %v353
        %v355 = vpop.xlane.xlu0 %354
        %v356 = vsub.f32 %v323, %v334
        %v357 = vsub.f32 %v324, %v337
        %v358 = vsub.f32 %v325, %v340
        %v359 = vsub.f32 %v326, %v343
        %v360 = vsub.f32 %v327, %v346
        %v361 = vsub.f32 %v328, %v349
        %v362 = vsub.f32 %v329, %v352
        %v363 = vsub.f32 %v330, %v355
        %v364 = vmul.f32 %v356, 1.442695
        %v365 = vpow.pop %v364
        %v366 = vmul.f32 %v357, 1.442695
        %v367 = vpow.pop %v366
        %v368 = vmul.f32 %v358, 1.442695
        %v369 = vpow.pop %v368
        %v370 = vmul.f32 %v359, 1.442695
        %v371 = vpow.pop %v370
        %v372 = vmul.f32 %v360, 1.442695
        %v373 = vpow.pop %v372
        %v374 = vmul.f32 %v361, 1.442695
        %v375 = vpow.pop %v374
        %v376 = vmul.f32 %v362, 1.442695
        %v377 = vpow.pop %v376
        %v378 = vmul.f32 %v363, 1.442695
        %v379 = vpow.pop %v378
        %v380 = vsel %vm331, %v365, 0.0
        %381 = vadd.xlane.f32.xlu0 %v380
        %v382 = vpop.xlane.xlu0 %381
        %v383 = vsel %vm331, %v367, 0.0
        %384 = vadd.xlane.f32.xlu0 %v383
        %v385 = vpop.xlane.xlu0 %384
        %v386 = vsel %vm331, %v369, 0.0
        %387 = vadd.xlane.f32.xlu0 %v386
        %v388 = vpop.xlane.xlu0 %387
        %v389 = vsel %vm331, %v371, 0.0
        %390 = vadd.xlane.f32.xlu0 %v389
        %v391 = vpop.xlane.xlu0 %390
        %v392 = vsel %vm331, %v373, 0.0
        %393 = vadd.xlane.f32.xlu0 %v392
        %v394 = vpop.xlane.xlu0 %393
        %v395 = vsel %vm331, %v375, 0.0
        %396 = vadd.xlane.f32.xlu0 %v395
        %v397 = vpop.xlane.xlu0 %396
        %v398 = vsel %vm331, %v377, 0.0
        %399 = vadd.xlane.f32.xlu0 %v398
        %v400 = vpop.xlane.xlu0 %399
        %v401 = vsel %vm331, %v379, 0.0
        %402 = vadd.xlane.f32.xlu0 %v401
        %v403 = vpop.xlane.xlu0 %402
        %v404 = vrcp.pop %v382
        %v405 = vmul.f32 %v365, %v404
        %v406 = vrcp.pop %v385
        %v407 = vmul.f32 %v367, %v406
        %v408 = vrcp.pop %v388
        %v409 = vmul.f32 %v369, %v408
        %v410 = vrcp.pop %v391
        %v411 = vmul.f32 %v371, %v410
        %v412 = vrcp.pop %v394
        %v413 = vmul.f32 %v373, %v412
        %v414 = vrcp.pop %v397
        %v415 = vmul.f32 %v375, %v414
        %v416 = vrcp.pop %v400
        %v417 = vmul.f32 %v377, %v416
        %v418 = vrcp.pop %v403
        %v419 = vmul.f32 %v379, %v418
        %v420 = vld [vmem:[%s262] sm:$0xff]
        %v421 = vld [vmem:[%s262 + $0x8] sm:$0xff]
        %v422 = vld [vmem:[%s262 + $0x10] sm:$0xff]
        %v423 = vld [vmem:[%s262 + $0x18] sm:$0xff]
        %v424 = vld [vmem:[%s262 + $0x20] sm:$0xff]
        %v425 = vld [vmem:[%s262 + $0x28] sm:$0xff]
        %v426 = vld [vmem:[%s262 + $0x30] sm:$0xff]
        %v427 = vld [vmem:[%s262 + $0x38] sm:$0xff]
        %v428 = vadd.f32 %v420, %v306
        %v429 = vadd.f32 %v421, %v306
        %v430 = vadd.f32 %v422, %v306
        %v431 = vadd.f32 %v423, %v306
        %v432 = vadd.f32 %v424, %v306
        %v433 = vadd.f32 %v425, %v306
        %v434 = vadd.f32 %v426, %v306
        %v435 = vadd.f32 %v427, %v306
        %v436 = vsel %vm331, %v428, -inf
        %437 = vmax.xlane.f32.xlu0 %v436
        %v438 = vpop.xlane.xlu0 %437
        %v439 = vsel %vm331, %v429, -inf
        %440 = vmax.xlane.f32.xlu0 %v439
        %v441 = vpop.xlane.xlu0 %440
        %v442 = vsel %vm331, %v430, -inf
        %443 = vmax.xlane.f32.xlu0 %v442
        %v444 = vpop.xlane.xlu0 %443
        %v445 = vsel %vm331, %v431, -inf
        %446 = vmax.xlane.f32.xlu0 %v445
        %v447 = vpop.xlane.xlu0 %446
        %v448 = vsel %vm331, %v432, -inf
        %449 = vmax.xlane.f32.xlu0 %v448
        %v450 = vpop.xlane.xlu0 %449
        %v451 = vsel %vm331, %v433, -inf
        %452 = vmax.xlane.f32.xlu0 %v451
        %v453 = vpop.xlane.xlu0 %452
        %v454 = vsel %vm331, %v434, -inf
        %455 = vmax.xlane.f32.xlu0 %v454
        %v456 = vpop.xlane.xlu0 %455
        %v457 = vsel %vm331, %v435, -inf
        %458 = vmax.xlane.f32.xlu0 %v457
        %v459 = vpop.xlane.xlu0 %458
        %v460 = vsub.f32 %v428, %v438
        %v461 = vsub.f32 %v429, %v441
        %v462 = vsub.f32 %v430, %v444
        %v463 = vsub.f32 %v431, %v447
        %v464 = vsub.f32 %v432, %v450
        %v465 = vsub.f32 %v433, %v453
        %v466 = vsub.f32 %v434, %v456
        %v467 = vsub.f32 %v435, %v459
        %v468 = vmul.f32 %v460, 1.442695
        %v469 = vpow.pop %v468
        %v470 = vmul.f32 %v461, 1.442695
        %v471 = vpow.pop %v470
        %v472 = vmul.f32 %v462, 1.442695
        %v473 = vpow.pop %v472
        %v474 = vmul.f32 %v463, 1.442695
        %v475 = vpow.pop %v474
        %v476 = vmul.f32 %v464, 1.442695
        %v477 = vpow.pop %v476
        %v478 = vmul.f32 %v465, 1.442695
        %v479 = vpow.pop %v478
        %v480 = vmul.f32 %v466, 1.442695
        %v481 = vpow.pop %v480
        %v482 = vmul.f32 %v467, 1.442695
        %v483 = vpow.pop %v482
        %v484 = vsel %vm331, %v469, 0.0
        %485 = vadd.xlane.f32.xlu0 %v484
        %v486 = vpop.xlane.xlu0 %485
        %v487 = vsel %vm331, %v471, 0.0
        %488 = vadd.xlane.f32.xlu0 %v487
        %v489 = vpop.xlane.xlu0 %488
        %v490 = vsel %vm331, %v473, 0.0
        %491 = vadd.xlane.f32.xlu0 %v490
        %v492 = vpop.xlane.xlu0 %491
        %v493 = vsel %vm331, %v475, 0.0
        %494 = vadd.xlane.f32.xlu0 %v493
        %v495 = vpop.xlane.xlu0 %494
        %v496 = vsel %vm331, %v477, 0.0
        %497 = vadd.xlane.f32.xlu0 %v496
        %v498 = vpop.xlane.xlu0 %497
        %v499 = vsel %vm331, %v479, 0.0
        %500 = vadd.xlane.f32.xlu0 %v499
        %v501 = vpop.xlane.xlu0 %500
        %v502 = vsel %vm331, %v481, 0.0
        %503 = vadd.xlane.f32.xlu0 %v502
        %v504 = vpop.xlane.xlu0 %503
        %v505 = vsel %vm331, %v483, 0.0
        %506 = vadd.xlane.f32.xlu0 %v505
        %v507 = vpop.xlane.xlu0 %506
        %v508 = vrcp.pop %v486
        %v509 = vmul.f32 %v469, %v508
        %v510 = vrcp.pop %v489
        %v511 = vmul.f32 %v471, %v510
        %v512 = vrcp.pop %v492
        %v513 = vmul.f32 %v473, %v512
        %v514 = vrcp.pop %v495
        %v515 = vmul.f32 %v475, %v514
        %v516 = vrcp.pop %v498
        %v517 = vmul.f32 %v477, %v516
        %v518 = vrcp.pop %v501
        %v519 = vmul.f32 %v479, %v518
        %v520 = vrcp.pop %v504
        %v521 = vmul.f32 %v481, %v520
        %v522 = vrcp.pop %v507
        %v523 = vmul.f32 %v483, %v522
        %v525 = vsel %vm331, %v405, 0
        %527 = vmatprep.subr.mxu0 0.0
        %528 = vmatpush1.msra.mxu0 %v307
        %529 = vmatprep.subr.mxu0 0.0
        %530 = vmatpush1.msra.mxu0 0.0
        %531 = vmatprep.subr.mxu0 0.0
        %532 = vmatpush1.msra.mxu0 0.0
        %533 = vmatprep.subr.mxu0 0.0
        %534 = vmatpush1.msra.mxu0 0.0
        %535 = vmatprep.subr.mxu0 0.0
        %536 = vmatpush1.msra.mxu0 0.0
        %537 = vmatprep.subr.mxu0 0.0
        %538 = vmatpush1.msra.mxu0 0.0
        %539 = vmatprep.subr.mxu0 0.0
        %540 = vmatpush1.msra.mxu0 0.0
        %541 = vmatprep.subr.mxu0 0.0
        %542 = vmatpush1.msra.mxu0 0.0
        %543 = vmatprep.subr.mxu0 0.0
        %544 = vmatpush1.msra.mxu0 0.0
        %545 = vmatprep.subr.mxu0 0.0
        %546 = vmatpush1.msra.mxu0 0.0
        %547 = vmatprep.subr.mxu0 0.0
        %548 = vmatpush1.msra.mxu0 0.0
        %549 = vmatprep.subr.mxu0 0.0
        %550 = vmatpush1.msra.mxu0 0.0
        %551 = vmatprep.subr.mxu0 0.0
        %552 = vmatpush1.msra.mxu0 0.0
        %553 = vmatprep.subr.mxu0 0.0
        %554 = vmatpush1.msra.mxu0 0.0
        %555 = vmatprep.subr.mxu0 0.0
        %556 = vmatpush1.msra.mxu0 0.0
        %557 = vmatprep.subr.mxu0 0.0
        %558 = vmatpush1.msra.mxu0 0.0
        %559 = vmatprep.subr.mxu0 0.0
        %560 = vmatpush1.msra.mxu0 0.0
        %561 = vmatprep.subr.mxu0 0.0
        %562 = vmatpush1.msra.mxu0 0.0
        %563 = vmatprep.subr.mxu0 0.0
        %564 = vmatpush1.msra.mxu0 0.0
        %565 = vmatprep.subr.mxu0 0.0
        %566 = vmatpush1.msra.mxu0 0.0
        %567 = vmatprep.subr.mxu0 0.0
        %568 = vmatpush1.msra.mxu0 0.0
        %569 = vmatprep.subr.mxu0 0.0
        %570 = vmatpush1.msra.mxu0 0.0
        %571 = vmatprep.subr.mxu0 0.0
        %572 = vmatpush1.msra.mxu0 0.0
        %573 = vmatprep.subr.mxu0 0.0
        %574 = vmatpush1.msra.mxu0 0.0
        %575 = vmatprep.subr.mxu0 0.0
        %576 = vmatpush1.msra.mxu0 0.0
        %577 = vmatprep.subr.mxu0 0.0
        %578 = vmatpush1.msra.mxu0 0.0
        %579 = vmatprep.subr.mxu0 0.0
        %580 = vmatpush1.msra.mxu0 0.0
        %581 = vmatprep.subr.mxu0 0.0
        %582 = vmatpush1.msra.mxu0 0.0
        %583 = vmatprep.subr.mxu0 0.0
        %584 = vmatpush1.msra.mxu0 0.0
        %585 = vmatprep.subr.mxu0 0.0
        %586 = vmatpush1.msra.mxu0 0.0
        %587 = vmatprep.subr.mxu0 0.0
        %588 = vmatpush1.msra.mxu0 0.0
        %589 = vmatprep.subr.mxu0 0.0
        %590 = vmatpush1.msra.mxu0 0.0
        %591 = vmatprep.mubr.f32.mxu0 0.0
        %592 = vmatmul.mubr.f32.gmra.mrb[0].mxu0 %v525
        %v593 = vpop.f32.mrb[0].mxu0
        %v594 = vadd.f32 0.0, %v593
        %v595 = vpop.f32.mrb[0].mxu0
        %596 = vdwg.mxu0
        %v598 = vsel %vm331, %v407, 0
        %600 = vmatprep.subr.mxu0 0.0
        %601 = vmatpush1.msra.mxu0 %v308
        %602 = vmatprep.subr.mxu0 0.0
        %603 = vmatpush1.msra.mxu0 0.0
        %604 = vmatprep.subr.mxu0 0.0
        %605 = vmatpush1.msra.mxu0 0.0
        %606 = vmatprep.subr.mxu0 0.0
        %607 = vmatpush1.msra.mxu0 0.0
        %608 = vmatprep.subr.mxu0 0.0
        %609 = vmatpush1.msra.mxu0 0.0
        %610 = vmatprep.subr.mxu0 0.0
        %611 = vmatpush1.msra.mxu0 0.0
        %612 = vmatprep.subr.mxu0 0.0
        %613 = vmatpush1.msra.mxu0 0.0
        %614 = vmatprep.subr.mxu0 0.0
        %615 = vmatpush1.msra.mxu0 0.0
        %616 = vmatprep.subr.mxu0 0.0
        %617 = vmatpush1.msra.mxu0 0.0
        %618 = vmatprep.subr.mxu0 0.0
        %619 = vmatpush1.msra.mxu0 0.0
        %620 = vmatprep.subr.mxu0 0.0
        %621 = vmatpush1.msra.mxu0 0.0
        %622 = vmatprep.subr.mxu0 0.0
        %623 = vmatpush1.msra.mxu0 0.0
        %624 = vmatprep.subr.mxu0 0.0
        %625 = vmatpush1.msra.mxu0 0.0
        %626 = vmatprep.subr.mxu0 0.0
        %627 = vmatpush1.msra.mxu0 0.0
        %628 = vmatprep.subr.mxu0 0.0
        %629 = vmatpush1.msra.mxu0 0.0
        %630 = vmatprep.subr.mxu0 0.0
        %631 = vmatpush1.msra.mxu0 0.0
        %632 = vmatprep.subr.mxu0 0.0
        %633 = vmatpush1.msra.mxu0 0.0
        %634 = vmatprep.subr.mxu0 0.0
        %635 = vmatpush1.msra.mxu0 0.0
        %636 = vmatprep.subr.mxu0 0.0
        %637 = vmatpush1.msra.mxu0 0.0
        %638 = vmatprep.subr.mxu0 0.0
        %639 = vmatpush1.msra.mxu0 0.0
        %640 = vmatprep.subr.mxu0 0.0
        %641 = vmatpush1.msra.mxu0 0.0
        %642 = vmatprep.subr.mxu0 0.0
        %643 = vmatpush1.msra.mxu0 0.0
        %644 = vmatprep.subr.mxu0 0.0
        %645 = vmatpush1.msra.mxu0 0.0
        %646 = vmatprep.subr.mxu0 0.0
        %647 = vmatpush1.msra.mxu0 0.0
        %648 = vmatprep.subr.mxu0 0.0
        %649 = vmatpush1.msra.mxu0 0.0
        %650 = vmatprep.subr.mxu0 0.0
        %651 = vmatpush1.msra.mxu0 0.0
        %652 = vmatprep.subr.mxu0 0.0
        %653 = vmatpush1.msra.mxu0 0.0
        %654 = vmatprep.subr.mxu0 0.0
        %655 = vmatpush1.msra.mxu0 0.0
        %656 = vmatprep.subr.mxu0 0.0
        %657 = vmatpush1.msra.mxu0 0.0
        %658 = vmatprep.subr.mxu0 0.0
        %659 = vmatpush1.msra.mxu0 0.0
        %660 = vmatprep.subr.mxu0 0.0
        %661 = vmatpush1.msra.mxu0 0.0
        %662 = vmatprep.subr.mxu0 0.0
        %663 = vmatpush1.msra.mxu0 0.0
        %664 = vmatprep.mubr.f32.mxu0 0.0
        %665 = vmatmul.mubr.f32.gmra.mrb[0].mxu0 %v598
        %v666 = vpop.f32.mrb[0].mxu0
        %v667 = vadd.f32 0.0, %v666
        %v668 = vpop.f32.mrb[0].mxu0
        %669 = vdwg.mxu0
        %v671 = vsel %vm331, %v409, 0
        %673 = vmatprep.subr.mxu0 0.0
        %674 = vmatpush1.msra.mxu0 %v309
        %675 = vmatprep.subr.mxu0 0.0
        %676 = vmatpush1.msra.mxu0 0.0
        %677 = vmatprep.subr.mxu0 0.0
        %678 = vmatpush1.msra.mxu0 0.0
        %679 = vmatprep.subr.mxu0 0.0
        %680 = vmatpush1.msra.mxu0 0.0
        %681 = vmatprep.subr.mxu0 0.0
        %682 = vmatpush1.msra.mxu0 0.0
        %683 = vmatprep.subr.mxu0 0.0
        %684 = vmatpush1.msra.mxu0 0.0
        %685 = vmatprep.subr.mxu0 0.0
        %686 = vmatpush1.msra.mxu0 0.0
        %687 = vmatprep.subr.mxu0 0.0
        %688 = vmatpush1.msra.mxu0 0.0
        %689 = vmatprep.subr.mxu0 0.0
        %690 = vmatpush1.msra.mxu0 0.0
        %691 = vmatprep.subr.mxu0 0.0
        %692 = vmatpush1.msra.mxu0 0.0
        %693 = vmatprep.subr.mxu0 0.0
        %694 = vmatpush1.msra.mxu0 0.0
        %695 = vmatprep.subr.mxu0 0.0
        %696 = vmatpush1.msra.mxu0 0.0
        %697 = vmatprep.subr.mxu0 0.0
        %698 = vmatpush1.msra.mxu0 0.0
        %699 = vmatprep.subr.mxu0 0.0
        %700 = vmatpush1.msra.mxu0 0.0
        %701 = vmatprep.subr.mxu0 0.0
        %702 = vmatpush1.msra.mxu0 0.0
        %703 = vmatprep.subr.mxu0 0.0
        %704 = vmatpush1.msra.mxu0 0.0
        %705 = vmatprep.subr.mxu0 0.0
        %706 = vmatpush1.msra.mxu0 0.0
        %707 = vmatprep.subr.mxu0 0.0
        %708 = vmatpush1.msra.mxu0 0.0
        %709 = vmatprep.subr.mxu0 0.0
        %710 = vmatpush1.msra.mxu0 0.0
        %711 = vmatprep.subr.mxu0 0.0
        %712 = vmatpush1.msra.mxu0 0.0
        %713 = vmatprep.subr.mxu0 0.0
        %714 = vmatpush1.msra.mxu0 0.0
        %715 = vmatprep.subr.mxu0 0.0
        %716 = vmatpush1.msra.mxu0 0.0
        %717 = vmatprep.subr.mxu0 0.0
        %718 = vmatpush1.msra.mxu0 0.0
        %719 = vmatprep.subr.mxu0 0.0
        %720 = vmatpush1.msra.mxu0 0.0
        %721 = vmatprep.subr.mxu0 0.0
        %722 = vmatpush1.msra.mxu0 0.0
        %723 = vmatprep.subr.mxu0 0.0
        %724 = vmatpush1.msra.mxu0 0.0
        %725 = vmatprep.subr.mxu0 0.0
        %726 = vmatpush1.msra.mxu0 0.0
        %727 = vmatprep.subr.mxu0 0.0
        %728 = vmatpush1.msra.mxu0 0.0
        %729 = vmatprep.subr.mxu0 0.0
        %730 = vmatpush1.msra.mxu0 0.0
        %731 = vmatprep.subr.mxu0 0.0
        %732 = vmatpush1.msra.mxu0 0.0
        %733 = vmatprep.subr.mxu0 0.0
        %734 = vmatpush1.msra.mxu0 0.0
        %735 = vmatprep.subr.mxu0 0.0
        %736 = vmatpush1.msra.mxu0 0.0
        %737 = vmatprep.mubr.f32.mxu0 0.0
        %738 = vmatmul.mubr.f32.gmra.mrb[0].mxu0 %v671
        %v739 = vpop.f32.mrb[0].mxu0
        %v740 = vadd.f32 0.0, %v739
        %v741 = vpop.f32.mrb[0].mxu0
        %742 = vdwg.mxu0
        %v744 = vsel %vm331, %v411, 0
        %746 = vmatprep.subr.mxu0 0.0
        %747 = vmatpush1.msra.mxu0 %v310
        %748 = vmatprep.subr.mxu0 0.0
        %749 = vmatpush1.msra.mxu0 0.0
        %750 = vmatprep.subr.mxu0 0.0
        %751 = vmatpush1.msra.mxu0 0.0
        %752 = vmatprep.subr.mxu0 0.0
        %753 = vmatpush1.msra.mxu0 0.0
        %754 = vmatprep.subr.mxu0 0.0
        %755 = vmatpush1.msra.mxu0 0.0
        %756 = vmatprep.subr.mxu0 0.0
        %757 = vmatpush1.msra.mxu0 0.0
        %758 = vmatprep.subr.mxu0 0.0
        %759 = vmatpush1.msra.mxu0 0.0
        %760 = vmatprep.subr.mxu0 0.0
        %761 = vmatpush1.msra.mxu0 0.0
        %762 = vmatprep.subr.mxu0 0.0
        %763 = vmatpush1.msra.mxu0 0.0
        %764 = vmatprep.subr.mxu0 0.0
        %765 = vmatpush1.msra.mxu0 0.0
        %766 = vmatprep.subr.mxu0 0.0
        %767 = vmatpush1.msra.mxu0 0.0
        %768 = vmatprep.subr.mxu0 0.0
        %769 = vmatpush1.msra.mxu0 0.0
        %770 = vmatprep.subr.mxu0 0.0
        %771 = vmatpush1.msra.mxu0 0.0
        %772 = vmatprep.subr.mxu0 0.0
        %773 = vmatpush1.msra.mxu0 0.0
        %774 = vmatprep.subr.mxu0 0.0
        %775 = vmatpush1.msra.mxu0 0.0
        %776 = vmatprep.subr.mxu0 0.0
        %777 = vmatpush1.msra.mxu0 0.0
        %778 = vmatprep.subr.mxu0 0.0
        %779 = vmatpush1.msra.mxu0 0.0
        %780 = vmatprep.subr.mxu0 0.0
        %781 = vmatpush1.msra.mxu0 0.0
        %782 = vmatprep.subr.mxu0 0.0
        %783 = vmatpush1.msra.mxu0 0.0
        %784 = vmatprep.subr.mxu0 0.0
        %785 = vmatpush1.msra.mxu0 0.0
        %786 = vmatprep.subr.mxu0 0.0
        %787 = vmatpush1.msra.mxu0 0.0
        %788 = vmatprep.subr.mxu0 0.0
        %789 = vmatpush1.msra.mxu0 0.0
        %790 = vmatprep.subr.mxu0 0.0
        %791 = vmatpush1.msra.mxu0 0.0
        %792 = vmatprep.subr.mxu0 0.0
        %793 = vmatpush1.msra.mxu0 0.0
        %794 = vmatprep.subr.mxu0 0.0
        %795 = vmatpush1.msra.mxu0 0.0
        %796 = vmatprep.subr.mxu0 0.0
        %797 = vmatpush1.msra.mxu0 0.0
        %798 = vmatprep.subr.mxu0 0.0
        %799 = vmatpush1.msra.mxu0 0.0
        %800 = vmatprep.subr.mxu0 0.0
        %801 = vmatpush1.msra.mxu0 0.0
        %802 = vmatprep.subr.mxu0 0.0
        %803 = vmatpush1.msra.mxu0 0.0
        %804 = vmatprep.subr.mxu0 0.0
        %805 = vmatpush1.msra.mxu0 0.0
        %806 = vmatprep.subr.mxu0 0.0
        %807 = vmatpush1.msra.mxu0 0.0
        %808 = vmatprep.subr.mxu0 0.0
        %809 = vmatpush1.msra.mxu0 0.0
        %810 = vmatprep.mubr.f32.mxu0 0.0
        %811 = vmatmul.mubr.f32.gmra.mrb[0].mxu0 %v744
        %v812 = vpop.f32.mrb[0].mxu0
        %v813 = vadd.f32 0.0, %v812
        %v814 = vpop.f32.mrb[0].mxu0
        %815 = vdwg.mxu0
        %v817 = vsel %vm331, %v413, 0
        %819 = vmatprep.subr.mxu0 0.0
        %820 = vmatpush1.msra.mxu0 %v311
        %821 = vmatprep.subr.mxu0 0.0
        %822 = vmatpush1.msra.mxu0 0.0
        %823 = vmatprep.subr.mxu0 0.0
        %824 = vmatpush1.msra.mxu0 0.0
        %825 = vmatprep.subr.mxu0 0.0
        %826 = vmatpush1.msra.mxu0 0.0
        %827 = vmatprep.subr.mxu0 0.0
        %828 = vmatpush1.msra.mxu0 0.0
        %829 = vmatprep.subr.mxu0 0.0
        %830 = vmatpush1.msra.mxu0 0.0
        %831 = vmatprep.subr.mxu0 0.0
        %832 = vmatpush1.msra.mxu0 0.0
        %833 = vmatprep.subr.mxu0 0.0
        %834 = vmatpush1.msra.mxu0 0.0
        %835 = vmatprep.subr.mxu0 0.0
        %836 = vmatpush1.msra.mxu0 0.0
        %837 = vmatprep.subr.mxu0 0.0
        %838 = vmatpush1.msra.mxu0 0.0
        %839 = vmatprep.subr.mxu0 0.0
        %840 = vmatpush1.msra.mxu0 0.0
        %841 = vmatprep.subr.mxu0 0.0
        %842 = vmatpush1.msra.mxu0 0.0
        %843 = vmatprep.subr.mxu0 0.0
        %844 = vmatpush1.msra.mxu0 0.0
        %845 = vmatprep.subr.mxu0 0.0
        %846 = vmatpush1.msra.mxu0 0.0
        %847 = vmatprep.subr.mxu0 0.0
        %848 = vmatpush1.msra.mxu0 0.0
        %849 = vmatprep.subr.mxu0 0.0
        %850 = vmatpush1.msra.mxu0 0.0
        %851 = vmatprep.subr.mxu0 0.0
        %852 = vmatpush1.msra.mxu0 0.0
        %853 = vmatprep.subr.mxu0 0.0
        %854 = vmatpush1.msra.mxu0 0.0
        %855 = vmatprep.subr.mxu0 0.0
        %856 = vmatpush1.msra.mxu0 0.0
        %857 = vmatprep.subr.mxu0 0.0
        %858 = vmatpush1.msra.mxu0 0.0
        %859 = vmatprep.subr.mxu0 0.0
        %860 = vmatpush1.msra.mxu0 0.0
        %861 = vmatprep.subr.mxu0 0.0
        %862 = vmatpush1.msra.mxu0 0.0
        %863 = vmatprep.subr.mxu0 0.0
        %864 = vmatpush1.msra.mxu0 0.0
        %865 = vmatprep.subr.mxu0 0.0
        %866 = vmatpush1.msra.mxu0 0.0
        %867 = vmatprep.subr.mxu0 0.0
        %868 = vmatpush1.msra.mxu0 0.0
        %869 = vmatprep.subr.mxu0 0.0
        %870 = vmatpush1.msra.mxu0 0.0
        %871 = vmatprep.subr.mxu0 0.0
        %872 = vmatpush1.msra.mxu0 0.0
        %873 = vmatprep.subr.mxu0 0.0
        %874 = vmatpush1.msra.mxu0 0.0
        %875 = vmatprep.subr.mxu0 0.0
        %876 = vmatpush1.msra.mxu0 0.0
        %877 = vmatprep.subr.mxu0 0.0
        %878 = vmatpush1.msra.mxu0 0.0
        %879 = vmatprep.subr.mxu0 0.0
        %880 = vmatpush1.msra.mxu0 0.0
        %881 = vmatprep.subr.mxu0 0.0
        %882 = vmatpush1.msra.mxu0 0.0
        %883 = vmatprep.mubr.f32.mxu0 0.0
        %884 = vmatmul.mubr.f32.gmra.mrb[0].mxu0 %v817
        %v885 = vpop.f32.mrb[0].mxu0
        %v886 = vadd.f32 0.0, %v885
        %v887 = vpop.f32.mrb[0].mxu0
        %888 = vdwg.mxu0
        %v890 = vsel %vm331, %v415, 0
        %892 = vmatprep.subr.mxu0 0.0
        %893 = vmatpush1.msra.mxu0 %v312
        %894 = vmatprep.subr.mxu0 0.0
        %895 = vmatpush1.msra.mxu0 0.0
        %896 = vmatprep.subr.mxu0 0.0
        %897 = vmatpush1.msra.mxu0 0.0
        %898 = vmatprep.subr.mxu0 0.0
        %899 = vmatpush1.msra.mxu0 0.0
        %900 = vmatprep.subr.mxu0 0.0
        %901 = vmatpush1.msra.mxu0 0.0
        %902 = vmatprep.subr.mxu0 0.0
        %903 = vmatpush1.msra.mxu0 0.0
        %904 = vmatprep.subr.mxu0 0.0
        %905 = vmatpush1.msra.mxu0 0.0
        %906 = vmatprep.subr.mxu0 0.0
        %907 = vmatpush1.msra.mxu0 0.0
        %908 = vmatprep.subr.mxu0 0.0
        %909 = vmatpush1.msra.mxu0 0.0
        %910 = vmatprep.subr.mxu0 0.0
        %911 = vmatpush1.msra.mxu0 0.0
        %912 = vmatprep.subr.mxu0 0.0
        %913 = vmatpush1.msra.mxu0 0.0
        %914 = vmatprep.subr.mxu0 0.0
        %915 = vmatpush1.msra.mxu0 0.0
        %916 = vmatprep.subr.mxu0 0.0
        %917 = vmatpush1.msra.mxu0 0.0
        %918 = vmatprep.subr.mxu0 0.0
        %919 = vmatpush1.msra.mxu0 0.0
        %920 = vmatprep.subr.mxu0 0.0
        %921 = vmatpush1.msra.mxu0 0.0
        %922 = vmatprep.subr.mxu0 0.0
        %923 = vmatpush1.msra.mxu0 0.0
        %924 = vmatprep.subr.mxu0 0.0
        %925 = vmatpush1.msra.mxu0 0.0
        %926 = vmatprep.subr.mxu0 0.0
        %927 = vmatpush1.msra.mxu0 0.0
        %928 = vmatprep.subr.mxu0 0.0
        %929 = vmatpush1.msra.mxu0 0.0
        %930 = vmatprep.subr.mxu0 0.0
        %931 = vmatpush1.msra.mxu0 0.0
        %932 = vmatprep.subr.mxu0 0.0
        %933 = vmatpush1.msra.mxu0 0.0
        %934 = vmatprep.subr.mxu0 0.0
        %935 = vmatpush1.msra.mxu0 0.0
        %936 = vmatprep.subr.mxu0 0.0
        %937 = vmatpush1.msra.mxu0 0.0
        %938 = vmatprep.subr.mxu0 0.0
        %939 = vmatpush1.msra.mxu0 0.0
        %940 = vmatprep.subr.mxu0 0.0
        %941 = vmatpush1.msra.mxu0 0.0
        %942 = vmatprep.subr.mxu0 0.0
        %943 = vmatpush1.msra.mxu0 0.0
        %944 = vmatprep.subr.mxu0 0.0
        %945 = vmatpush1.msra.mxu0 0.0
        %946 = vmatprep.subr.mxu0 0.0
        %947 = vmatpush1.msra.mxu0 0.0
        %948 = vmatprep.subr.mxu0 0.0
        %949 = vmatpush1.msra.mxu0 0.0
        %950 = vmatprep.subr.mxu0 0.0
        %951 = vmatpush1.msra.mxu0 0.0
        %952 = vmatprep.subr.mxu0 0.0
        %953 = vmatpush1.msra.mxu0 0.0
        %954 = vmatprep.subr.mxu0 0.0
        %955 = vmatpush1.msra.mxu0 0.0
        %956 = vmatprep.mubr.f32.mxu0 0.0
        %957 = vmatmul.mubr.f32.gmra.mrb[0].mxu0 %v890
        %v958 = vpop.f32.mrb[0].mxu0
        %v959 = vadd.f32 0.0, %v958
        %v960 = vpop.f32.mrb[0].mxu0
        %961 = vdwg.mxu0
        %v963 = vsel %vm331, %v417, 0
        %965 = vmatprep.subr.mxu0 0.0
        %966 = vmatpush1.msra.mxu0 %v313
        %967 = vmatprep.subr.mxu0 0.0
        %968 = vmatpush1.msra.mxu0 0.0
        %969 = vmatprep.subr.mxu0 0.0
        %970 = vmatpush1.msra.mxu0 0.0
        %971 = vmatprep.subr.mxu0 0.0
        %972 = vmatpush1.msra.mxu0 0.0
        %973 = vmatprep.subr.mxu0 0.0
        %974 = vmatpush1.msra.mxu0 0.0
        %975 = vmatprep.subr.mxu0 0.0
        %976 = vmatpush1.msra.mxu0 0.0
        %977 = vmatprep.subr.mxu0 0.0
        %978 = vmatpush1.msra.mxu0 0.0
        %979 = vmatprep.subr.mxu0 0.0
        %980 = vmatpush1.msra.mxu0 0.0
        %981 = vmatprep.subr.mxu0 0.0
        %982 = vmatpush1.msra.mxu0 0.0
        %983 = vmatprep.subr.mxu0 0.0
        %984 = vmatpush1.msra.mxu0 0.0
        %985 = vmatprep.subr.mxu0 0.0
        %986 = vmatpush1.msra.mxu0 0.0
        %987 = vmatprep.subr.mxu0 0.0
        %988 = vmatpush1.msra.mxu0 0.0
        %989 = vmatprep.subr.mxu0 0.0
        %990 = vmatpush1.msra.mxu0 0.0
        %991 = vmatprep.subr.mxu0 0.0
        %992 = vmatpush1.msra.mxu0 0.0
        %993 = vmatprep.subr.mxu0 0.0
        %994 = vmatpush1.msra.mxu0 0.0
        %995 = vmatprep.subr.mxu0 0.0
        %996 = vmatpush1.msra.mxu0 0.0
        %997 = vmatprep.subr.mxu0 0.0
        %998 = vmatpush1.msra.mxu0 0.0
        %999 = vmatprep.subr.mxu0 0.0
        %1000 = vmatpush1.msra.mxu0 0.0
        %1001 = vmatprep.subr.mxu0 0.0
        %1002 = vmatpush1.msra.mxu0 0.0
        %1003 = vmatprep.subr.mxu0 0.0
        %1004 = vmatpush1.msra.mxu0 0.0
        %1005 = vmatprep.subr.mxu0 0.0
        %1006 = vmatpush1.msra.mxu0 0.0
        %1007 = vmatprep.subr.mxu0 0.0
        %1008 = vmatpush1.msra.mxu0 0.0
        %1009 = vmatprep.subr.mxu0 0.0
        %1010 = vmatpush1.msra.mxu0 0.0
        %1011 = vmatprep.subr.mxu0 0.0
        %1012 = vmatpush1.msra.mxu0 0.0
        %1013 = vmatprep.subr.mxu0 0.0
        %1014 = vmatpush1.msra.mxu0 0.0
        %1015 = vmatprep.subr.mxu0 0.0
        %1016 = vmatpush1.msra.mxu0 0.0
        %1017 = vmatprep.subr.mxu0 0.0
        %1018 = vmatpush1.msra.mxu0 0.0
        %1019 = vmatprep.subr.mxu0 0.0
        %1020 = vmatpush1.msra.mxu0 0.0
        %1021 = vmatprep.subr.mxu0 0.0
        %1022 = vmatpush1.msra.mxu0 0.0
        %1023 = vmatprep.subr.mxu0 0.0
        %1024 = vmatpush1.msra.mxu0 0.0
        %1025 = vmatprep.subr.mxu0 0.0
        %1026 = vmatpush1.msra.mxu0 0.0
        %1027 = vmatprep.subr.mxu0 0.0
        %1028 = vmatpush1.msra.mxu0 0.0
        %1029 = vmatprep.mubr.f32.mxu0 0.0
        %1030 = vmatmul.mubr.f32.gmra.mrb[0].mxu0 %v963
        %v1031 = vpop.f32.mrb[0].mxu0
        %v1032 = vadd.f32 0.0, %v1031
        %v1033 = vpop.f32.mrb[0].mxu0
        %1034 = vdwg.mxu0
        %v1036 = vsel %vm331, %v419, 0
        %1038 = vmatprep.subr.mxu0 0.0
        %1039 = vmatpush1.msra.mxu0 %v314
        %1040 = vmatprep.subr.mxu0 0.0
        %1041 = vmatpush1.msra.mxu0 0.0
        %1042 = vmatprep.subr.mxu0 0.0
        %1043 = vmatpush1.msra.mxu0 0.0
        %1044 = vmatprep.subr.mxu0 0.0
        %1045 = vmatpush1.msra.mxu0 0.0
        %1046 = vmatprep.subr.mxu0 0.0
        %1047 = vmatpush1.msra.mxu0 0.0
        %1048 = vmatprep.subr.mxu0 0.0
        %1049 = vmatpush1.msra.mxu0 0.0
        %1050 = vmatprep.subr.mxu0 0.0
        %1051 = vmatpush1.msra.mxu0 0.0
        %1052 = vmatprep.subr.mxu0 0.0
        %1053 = vmatpush1.msra.mxu0 0.0
        %1054 = vmatprep.subr.mxu0 0.0
        %1055 = vmatpush1.msra.mxu0 0.0
        %1056 = vmatprep.subr.mxu0 0.0
        %1057 = vmatpush1.msra.mxu0 0.0
        %1058 = vmatprep.subr.mxu0 0.0
        %1059 = vmatpush1.msra.mxu0 0.0
        %1060 = vmatprep.subr.mxu0 0.0
        %1061 = vmatpush1.msra.mxu0 0.0
        %1062 = vmatprep.subr.mxu0 0.0
        %1063 = vmatpush1.msra.mxu0 0.0
        %1064 = vmatprep.subr.mxu0 0.0
        %1065 = vmatpush1.msra.mxu0 0.0
        %1066 = vmatprep.subr.mxu0 0.0
        %1067 = vmatpush1.msra.mxu0 0.0
        %1068 = vmatprep.subr.mxu0 0.0
        %1069 = vmatpush1.msra.mxu0 0.0
        %1070 = vmatprep.subr.mxu0 0.0
        %1071 = vmatpush1.msra.mxu0 0.0
        %1072 = vmatprep.subr.mxu0 0.0
        %1073 = vmatpush1.msra.mxu0 0.0
        %1074 = vmatprep.subr.mxu0 0.0
        %1075 = vmatpush1.msra.mxu0 0.0
        %1076 = vmatprep.subr.mxu0 0.0
        %1077 = vmatpush1.msra.mxu0 0.0
        %1078 = vmatprep.subr.mxu0 0.0
        %1079 = vmatpush1.msra.mxu0 0.0
        %1080 = vmatprep.subr.mxu0 0.0
        %1081 = vmatpush1.msra.mxu0 0.0
        %1082 = vmatprep.subr.mxu0 0.0
        %1083 = vmatpush1.msra.mxu0 0.0
        %1084 = vmatprep.subr.mxu0 0.0
        %1085 = vmatpush1.msra.mxu0 0.0
        %1086 = vmatprep.subr.mxu0 0.0
        %1087 = vmatpush1.msra.mxu0 0.0
        %1088 = vmatprep.subr.mxu0 0.0
        %1089 = vmatpush1.msra.mxu0 0.0
        %1090 = vmatprep.subr.mxu0 0.0
        %1091 = vmatpush1.msra.mxu0 0.0
        %1092 = vmatprep.subr.mxu0 0.0
        %1093 = vmatpush1.msra.mxu0 0.0
        %1094 = vmatprep.subr.mxu0 0.0
        %1095 = vmatpush1.msra.mxu0 0.0
        %1096 = vmatprep.subr.mxu0 0.0
        %1097 = vmatpush1.msra.mxu0 0.0
        %1098 = vmatprep.subr.mxu0 0.0
        %1099 = vmatpush1.msra.mxu0 0.0
        %1100 = vmatprep.subr.mxu0 0.0
        %1101 = vmatpush1.msra.mxu0 0.0
        %1102 = vmatprep.mubr.f32.mxu0 0.0
        %1103 = vmatmul.mubr.f32.gmra.mrb[0].mxu0 %v1036
        %v1104 = vpop.f32.mrb[0].mxu0
        %v1105 = vadd.f32 0.0, %v1104
        %v1106 = vpop.f32.mrb[0].mxu0
        %1107 = vdwg.mxu0
        %vm1108 = vcmask 261120
        %1109 = vst.msk [vmem:[#allocation2] sm:$0xff] %vm1108, %v594
        %1110 = vst.msk [vmem:[#allocation2 + $0x8] sm:$0xff] %vm1108, %v667
        %1111 = vst.msk [vmem:[#allocation2 + $0x10] sm:$0xff] %vm1108, %v740
        %1112 = vst.msk [vmem:[#allocation2 + $0x18] sm:$0xff] %vm1108, %v813
        %1113 = vst.msk [vmem:[#allocation2 + $0x20] sm:$0xff] %vm1108, %v886
        %1114 = vst.msk [vmem:[#allocation2 + $0x28] sm:$0xff] %vm1108, %v959
        %1115 = vst.msk [vmem:[#allocation2 + $0x30] sm:$0xff] %vm1108, %v1032
        %1116 = vst.msk [vmem:[#allocation2 + $0x38] sm:$0xff] %vm1108, %v1105
        %v1117 = vld [vmem:[%s271] sm:$0x1]
        %v1118 = vld [vmem:[%s271 + $0x8] sm:$0x1]
        %v1119 = vld [vmem:[%s271 + $0x10] sm:$0x1]
        %v1120 = vld [vmem:[%s271 + $0x18] sm:$0x1]
        %v1121 = vld [vmem:[%s271 + $0x20] sm:$0x1]
        %v1122 = vld [vmem:[%s271 + $0x28] sm:$0x1]
        %v1123 = vld [vmem:[%s271 + $0x30] sm:$0x1]
        %v1124 = vld [vmem:[%s271 + $0x38] sm:$0x1]
        %v1133 = vrot.slane %v1118, 7
        %vm1134 = vcmask 1041409
        %v1135 = vsel %vm1134, %v1133, %v1117
        %v1136 = vrot.slane %v1119, 6
        %vm1137 = vcmask 1042434
        %v1138 = vsel %vm1137, %v1136, %v1135
        %v1139 = vrot.slane %v1120, 5
        %vm1140 = vcmask 1043459
        %v1141 = vsel %vm1140, %v1139, %v1138
        %v1142 = vrot.slane %v1121, 4
        %vm1143 = vcmask 1044484
        %v1144 = vsel %vm1143, %v1142, %v1141
        %v1145 = vrot.slane %v1122, 3
        %vm1146 = vcmask 1045509
        %v1147 = vsel %vm1146, %v1145, %v1144
        %v1148 = vrot.slane %v1123, 2
        %vm1149 = vcmask 1046534
        %v1150 = vsel %vm1149, %v1148, %v1147
        %v1151 = vrot.slane %v1124, 1
        %vm1152 = vcmask 1047559
        %v1153 = vsel %vm1152, %v1151, %v1150
        %v1156 = vsel %vm331, %v509, 0
        %1158 = vmatprep.subr.mxu0 0.0
        %1159 = vmatpush1.msra.mxu0 %v1153
        %1160 = vmatprep.subr.mxu0 0.0
        %1161 = vmatpush1.msra.mxu0 0.0
        %1162 = vmatprep.subr.mxu0 0.0
        %1163 = vmatpush1.msra.mxu0 0.0
        %1164 = vmatprep.subr.mxu0 0.0
        %1165 = vmatpush1.msra.mxu0 0.0
        %1166 = vmatprep.subr.mxu0 0.0
        %1167 = vmatpush1.msra.mxu0 0.0
        %1168 = vmatprep.subr.mxu0 0.0
        %1169 = vmatpush1.msra.mxu0 0.0
        %1170 = vmatprep.subr.mxu0 0.0
        %1171 = vmatpush1.msra.mxu0 0.0
        %1172 = vmatprep.subr.mxu0 0.0
        %1173 = vmatpush1.msra.mxu0 0.0
        %1174 = vmatprep.subr.mxu0 0.0
        %1175 = vmatpush1.msra.mxu0 0.0
        %1176 = vmatprep.subr.mxu0 0.0
        %1177 = vmatpush1.msra.mxu0 0.0
        %1178 = vmatprep.subr.mxu0 0.0
        %1179 = vmatpush1.msra.mxu0 0.0
        %1180 = vmatprep.subr.mxu0 0.0
        %1181 = vmatpush1.msra.mxu0 0.0
        %1182 = vmatprep.subr.mxu0 0.0
        %1183 = vmatpush1.msra.mxu0 0.0
        %1184 = vmatprep.subr.mxu0 0.0
        %1185 = vmatpush1.msra.mxu0 0.0
        %1186 = vmatprep.subr.mxu0 0.0
        %1187 = vmatpush1.msra.mxu0 0.0
        %1188 = vmatprep.subr.mxu0 0.0
        %1189 = vmatpush1.msra.mxu0 0.0
        %1190 = vmatprep.subr.mxu0 0.0
        %1191 = vmatpush1.msra.mxu0 0.0
        %1192 = vmatprep.subr.mxu0 0.0
        %1193 = vmatpush1.msra.mxu0 0.0
        %1194 = vmatprep.subr.mxu0 0.0
        %1195 = vmatpush1.msra.mxu0 0.0
        %1196 = vmatprep.subr.mxu0 0.0
        %1197 = vmatpush1.msra.mxu0 0.0
        %1198 = vmatprep.subr.mxu0 0.0
        %1199 = vmatpush1.msra.mxu0 0.0
        %1200 = vmatprep.subr.mxu0 0.0
        %1201 = vmatpush1.msra.mxu0 0.0
        %1202 = vmatprep.subr.mxu0 0.0
        %1203 = vmatpush1.msra.mxu0 0.0
        %1204 = vmatprep.subr.mxu0 0.0
        %1205 = vmatpush1.msra.mxu0 0.0
        %1206 = vmatprep.subr.mxu0 0.0
        %1207 = vmatpush1.msra.mxu0 0.0
        %1208 = vmatprep.subr.mxu0 0.0
        %1209 = vmatpush1.msra.mxu0 0.0
        %1210 = vmatprep.subr.mxu0 0.0
        %1211 = vmatpush1.msra.mxu0 0.0
        %1212 = vmatprep.subr.mxu0 0.0
        %1213 = vmatpush1.msra.mxu0 0.0
        %1214 = vmatprep.subr.mxu0 0.0
        %1215 = vmatpush1.msra.mxu0 0.0
        %1216 = vmatprep.subr.mxu0 0.0
        %1217 = vmatpush1.msra.mxu0 0.0
        %1218 = vmatprep.subr.mxu0 0.0
        %1219 = vmatpush1.msra.mxu0 0.0
        %1220 = vmatprep.subr.mxu0 0.0
        %1221 = vmatpush1.msra.mxu0 0.0
        %1222 = vmatprep.mubr.f32.mxu0 0.0
        %1223 = vmatmul.mubr.f32.gmra.mrb[0].mxu0 %v1156
        %v1224 = vpop.f32.mrb[0].mxu0
        %v1225 = vadd.f32 0.0, %v1224
        %v1226 = vpop.f32.mrb[0].mxu0
        %1227 = vdwg.mxu0
        %v1228 = vld [vmem:[#allocation2] sm:$0x1]
        %v1229 = vld [vmem:[#allocation2 + $0x8] sm:$0x1]
        %v1230 = vld [vmem:[#allocation2 + $0x10] sm:$0x1]
        %v1231 = vld [vmem:[#allocation2 + $0x18] sm:$0x1]
        %v1232 = vld [vmem:[#allocation2 + $0x20] sm:$0x1]
        %v1233 = vld [vmem:[#allocation2 + $0x28] sm:$0x1]
        %v1234 = vld [vmem:[#allocation2 + $0x30] sm:$0x1]
        %v1235 = vld [vmem:[#allocation2 + $0x38] sm:$0x1]
        %v1237 = vrot.slane %v1225, 1
        %v1238 = vrot.slane %v1225, 2
        %v1239 = vrot.slane %v1225, 3
        %v1240 = vrot.slane %v1225, 4
        %v1241 = vrot.slane %v1225, 5
        %v1242 = vrot.slane %v1225, 6
        %v1243 = vrot.slane %v1225, 7
        %v1252 = vadd.f32 %v1228, %v1225
        %v1253 = vadd.f32 %v1229, %v1237
        %v1254 = vadd.f32 %v1230, %v1238
        %v1255 = vadd.f32 %v1231, %v1239
        %v1256 = vadd.f32 %v1232, %v1240
        %v1257 = vadd.f32 %v1233, %v1241
        %v1258 = vadd.f32 %v1234, %v1242
        %v1259 = vadd.f32 %v1235, %v1243
        %vm1260 = vcmask 253952
        %1261 = vst.msk [vmem:[#allocation2] sm:$0x1] %vm1260, %v1252
        %1262 = vst.msk [vmem:[#allocation2 + $0x8] sm:$0x1] %vm1260, %v1253
        %1263 = vst.msk [vmem:[#allocation2 + $0x10] sm:$0x1] %vm1260, %v1254
        %1264 = vst.msk [vmem:[#allocation2 + $0x18] sm:$0x1] %vm1260, %v1255
        %1265 = vst.msk [vmem:[#allocation2 + $0x20] sm:$0x1] %vm1260, %v1256
        %1266 = vst.msk [vmem:[#allocation2 + $0x28] sm:$0x1] %vm1260, %v1257
        %1267 = vst.msk [vmem:[#allocation2 + $0x30] sm:$0x1] %vm1260, %v1258
        %1268 = vst.msk [vmem:[#allocation2 + $0x38] sm:$0x1] %vm1260, %v1259
        %v1269 = vld [vmem:[%s271 + $0x1] sm:$0x1]
        %v1270 = vld [vmem:[%s271 + $0x9] sm:$0x1]
        %v1271 = vld [vmem:[%s271 + $0x11] sm:$0x1]
        %v1272 = vld [vmem:[%s271 + $0x19] sm:$0x1]
        %v1273 = vld [vmem:[%s271 + $0x21] sm:$0x1]
        %v1274 = vld [vmem:[%s271 + $0x29] sm:$0x1]
        %v1275 = vld [vmem:[%s271 + $0x31] sm:$0x1]
        %v1276 = vld [vmem:[%s271 + $0x39] sm:$0x1]
        %v1285 = vrot.slane %v1270, 7
        %v1286 = vsel %vm1134, %v1285, %v1269
        %v1287 = vrot.slane %v1271, 6
        %v1288 = vsel %vm1137, %v1287, %v1286
        %v1289 = vrot.slane %v1272, 5
        %v1290 = vsel %vm1140, %v1289, %v1288
        %v1291 = vrot.slane %v1273, 4
        %v1292 = vsel %vm1143, %v1291, %v1290
        %v1293 = vrot.slane %v1274, 3
        %v1294 = vsel %vm1146, %v1293, %v1292
        %v1295 = vrot.slane %v1275, 2
        %v1296 = vsel %vm1149, %v1295, %v1294
        %v1297 = vrot.slane %v1276, 1
        %v1298 = vsel %vm1152, %v1297, %v1296
        %v1301 = vsel %vm331, %v511, 0
        %1303 = vmatprep.subr.mxu0 0.0
        %1304 = vmatpush1.msra.mxu0 %v1298
        %1305 = vmatprep.subr.mxu0 0.0
        %1306 = vmatpush1.msra.mxu0 0.0
        %1307 = vmatprep.subr.mxu0 0.0
        %1308 = vmatpush1.msra.mxu0 0.0
        %1309 = vmatprep.subr.mxu0 0.0
        %1310 = vmatpush1.msra.mxu0 0.0
        %1311 = vmatprep.subr.mxu0 0.0
        %1312 = vmatpush1.msra.mxu0 0.0
        %1313 = vmatprep.subr.mxu0 0.0
        %1314 = vmatpush1.msra.mxu0 0.0
        %1315 = vmatprep.subr.mxu0 0.0
        %1316 = vmatpush1.msra.mxu0 0.0
        %1317 = vmatprep.subr.mxu0 0.0
        %1318 = vmatpush1.msra.mxu0 0.0
        %1319 = vmatprep.subr.mxu0 0.0
        %1320 = vmatpush1.msra.mxu0 0.0
        %1321 = vmatprep.subr.mxu0 0.0
        %1322 = vmatpush1.msra.mxu0 0.0
        %1323 = vmatprep.subr.mxu0 0.0
        %1324 = vmatpush1.msra.mxu0 0.0
        %1325 = vmatprep.subr.mxu0 0.0
        %1326 = vmatpush1.msra.mxu0 0.0
        %1327 = vmatprep.subr.mxu0 0.0
        %1328 = vmatpush1.msra.mxu0 0.0
        %1329 = vmatprep.subr.mxu0 0.0
        %1330 = vmatpush1.msra.mxu0 0.0
        %1331 = vmatprep.subr.mxu0 0.0
        %1332 = vmatpush1.msra.mxu0 0.0
        %1333 = vmatprep.subr.mxu0 0.0
        %1334 = vmatpush1.msra.mxu0 0.0
        %1335 = vmatprep.subr.mxu0 0.0
        %1336 = vmatpush1.msra.mxu0 0.0
        %1337 = vmatprep.subr.mxu0 0.0
        %1338 = vmatpush1.msra.mxu0 0.0
        %1339 = vmatprep.subr.mxu0 0.0
        %1340 = vmatpush1.msra.mxu0 0.0
        %1341 = vmatprep.subr.mxu0 0.0
        %1342 = vmatpush1.msra.mxu0 0.0
        %1343 = vmatprep.subr.mxu0 0.0
        %1344 = vmatpush1.msra.mxu0 0.0
        %1345 = vmatprep.subr.mxu0 0.0
        %1346 = vmatpush1.msra.mxu0 0.0
        %1347 = vmatprep.subr.mxu0 0.0
        %1348 = vmatpush1.msra.mxu0 0.0
        %1349 = vmatprep.subr.mxu0 0.0
        %1350 = vmatpush1.msra.mxu0 0.0
        %1351 = vmatprep.subr.mxu0 0.0
        %1352 = vmatpush1.msra.mxu0 0.0
        %1353 = vmatprep.subr.mxu0 0.0
        %1354 = vmatpush1.msra.mxu0 0.0
        %1355 = vmatprep.subr.mxu0 0.0
        %1356 = vmatpush1.msra.mxu0 0.0
        %1357 = vmatprep.subr.mxu0 0.0
        %1358 = vmatpush1.msra.mxu0 0.0
        %1359 = vmatprep.subr.mxu0 0.0
        %1360 = vmatpush1.msra.mxu0 0.0
        %1361 = vmatprep.subr.mxu0 0.0
        %1362 = vmatpush1.msra.mxu0 0.0
        %1363 = vmatprep.subr.mxu0 0.0
        %1364 = vmatpush1.msra.mxu0 0.0
        %1365 = vmatprep.subr.mxu0 0.0
        %1366 = vmatpush1.msra.mxu0 0.0
        %1367 = vmatprep.mubr.f32.mxu0 0.0
        %1368 = vmatmul.mubr.f32.gmra.mrb[0].mxu0 %v1301
        %v1369 = vpop.f32.mrb[0].mxu0
        %v1370 = vadd.f32 0.0, %v1369
        %v1371 = vpop.f32.mrb[0].mxu0
        %1372 = vdwg.mxu0
        %v1373 = vld [vmem:[#allocation2 + $0x1] sm:$0x1]
        %v1374 = vld [vmem:[#allocation2 + $0x9] sm:$0x1]
        %v1375 = vld [vmem:[#allocation2 + $0x11] sm:$0x1]
        %v1376 = vld [vmem:[#allocation2 + $0x19] sm:$0x1]
        %v1377 = vld [vmem:[#allocation2 + $0x21] sm:$0x1]
        %v1378 = vld [vmem:[#allocation2 + $0x29] sm:$0x1]
        %v1379 = vld [vmem:[#allocation2 + $0x31] sm:$0x1]
        %v1380 = vld [vmem:[#allocation2 + $0x39] sm:$0x1]
        %v1382 = vrot.slane %v1370, 1
        %v1383 = vrot.slane %v1370, 2
        %v1384 = vrot.slane %v1370, 3
        %v1385 = vrot.slane %v1370, 4
        %v1386 = vrot.slane %v1370, 5
        %v1387 = vrot.slane %v1370, 6
        %v1388 = vrot.slane %v1370, 7
        %v1397 = vadd.f32 %v1373, %v1370
        %v1398 = vadd.f32 %v1374, %v1382
        %v1399 = vadd.f32 %v1375, %v1383
        %v1400 = vadd.f32 %v1376, %v1384
        %v1401 = vadd.f32 %v1377, %v1385
        %v1402 = vadd.f32 %v1378, %v1386
        %v1403 = vadd.f32 %v1379, %v1387
        %v1404 = vadd.f32 %v1380, %v1388
        %1405 = vst.msk [vmem:[#allocation2 + $0x1] sm:$0x1] %vm1260, %v1397
        %1406 = vst.msk [vmem:[#allocation2 + $0x9] sm:$0x1] %vm1260, %v1398
        %1407 = vst.msk [vmem:[#allocation2 + $0x11] sm:$0x1] %vm1260, %v1399
        %1408 = vst.msk [vmem:[#allocation2 + $0x19] sm:$0x1] %vm1260, %v1400
        %1409 = vst.msk [vmem:[#allocation2 + $0x21] sm:$0x1] %vm1260, %v1401
        %1410 = vst.msk [vmem:[#allocation2 + $0x29] sm:$0x1] %vm1260, %v1402
        %1411 = vst.msk [vmem:[#allocation2 + $0x31] sm:$0x1] %vm1260, %v1403
        %1412 = vst.msk [vmem:[#allocation2 + $0x39] sm:$0x1] %vm1260, %v1404
        %v1413 = vld [vmem:[%s271 + $0x2] sm:$0x1]
        %v1414 = vld [vmem:[%s271 + $0xa] sm:$0x1]
        %v1415 = vld [vmem:[%s271 + $0x12] sm:$0x1]
        %v1416 = vld [vmem:[%s271 + $0x1a] sm:$0x1]
        %v1417 = vld [vmem:[%s271 + $0x22] sm:$0x1]
        %v1418 = vld [vmem:[%s271 + $0x2a] sm:$0x1]
        %v1419 = vld [vmem:[%s271 + $0x32] sm:$0x1]
        %v1420 = vld [vmem:[%s271 + $0x3a] sm:$0x1]
        %v1429 = vrot.slane %v1414, 7
        %v1430 = vsel %vm1134, %v1429, %v1413
        %v1431 = vrot.slane %v1415, 6
        %v1432 = vsel %vm1137, %v1431, %v1430
        %v1433 = vrot.slane %v1416, 5
        %v1434 = vsel %vm1140, %v1433, %v1432
        %v1435 = vrot.slane %v1417, 4
        %v1436 = vsel %vm1143, %v1435, %v1434
        %v1437 = vrot.slane %v1418, 3
        %v1438 = vsel %vm1146, %v1437, %v1436
        %v1439 = vrot.slane %v1419, 2
        %v1440 = vsel %vm1149, %v1439, %v1438
        %v1441 = vrot.slane %v1420, 1
        %v1442 = vsel %vm1152, %v1441, %v1440
        %v1445 = vsel %vm331, %v513, 0
        %1447 = vmatprep.subr.mxu0 0.0
        %1448 = vmatpush1.msra.mxu0 %v1442
        %1449 = vmatprep.subr.mxu0 0.0
        %1450 = vmatpush1.msra.mxu0 0.0
        %1451 = vmatprep.subr.mxu0 0.0
        %1452 = vmatpush1.msra.mxu0 0.0
        %1453 = vmatprep.subr.mxu0 0.0
        %1454 = vmatpush1.msra.mxu0 0.0
        %1455 = vmatprep.subr.mxu0 0.0
        %1456 = vmatpush1.msra.mxu0 0.0
        %1457 = vmatprep.subr.mxu0 0.0
        %1458 = vmatpush1.msra.mxu0 0.0
        %1459 = vmatprep.subr.mxu0 0.0
        %1460 = vmatpush1.msra.mxu0 0.0
        %1461 = vmatprep.subr.mxu0 0.0
        %1462 = vmatpush1.msra.mxu0 0.0
        %1463 = vmatprep.subr.mxu0 0.0
        %1464 = vmatpush1.msra.mxu0 0.0
        %1465 = vmatprep.subr.mxu0 0.0
        %1466 = vmatpush1.msra.mxu0 0.0
        %1467 = vmatprep.subr.mxu0 0.0
        %1468 = vmatpush1.msra.mxu0 0.0
        %1469 = vmatprep.subr.mxu0 0.0
        %1470 = vmatpush1.msra.mxu0 0.0
        %1471 = vmatprep.subr.mxu0 0.0
        %1472 = vmatpush1.msra.mxu0 0.0
        %1473 = vmatprep.subr.mxu0 0.0
        %1474 = vmatpush1.msra.mxu0 0.0
        %1475 = vmatprep.subr.mxu0 0.0
        %1476 = vmatpush1.msra.mxu0 0.0
        %1477 = vmatprep.subr.mxu0 0.0
        %1478 = vmatpush1.msra.mxu0 0.0
        %1479 = vmatprep.subr.mxu0 0.0
        %1480 = vmatpush1.msra.mxu0 0.0
        %1481 = vmatprep.subr.mxu0 0.0
        %1482 = vmatpush1.msra.mxu0 0.0
        %1483 = vmatprep.subr.mxu0 0.0
        %1484 = vmatpush1.msra.mxu0 0.0
        %1485 = vmatprep.subr.mxu0 0.0
        %1486 = vmatpush1.msra.mxu0 0.0
        %1487 = vmatprep.subr.mxu0 0.0
        %1488 = vmatpush1.msra.mxu0 0.0
        %1489 = vmatprep.subr.mxu0 0.0
        %1490 = vmatpush1.msra.mxu0 0.0
        %1491 = vmatprep.subr.mxu0 0.0
        %1492 = vmatpush1.msra.mxu0 0.0
        %1493 = vmatprep.subr.mxu0 0.0
        %1494 = vmatpush1.msra.mxu0 0.0
        %1495 = vmatprep.subr.mxu0 0.0
        %1496 = vmatpush1.msra.mxu0 0.0
        %1497 = vmatprep.subr.mxu0 0.0
        %1498 = vmatpush1.msra.mxu0 0.0
        %1499 = vmatprep.subr.mxu0 0.0
        %1500 = vmatpush1.msra.mxu0 0.0
        %1501 = vmatprep.subr.mxu0 0.0
        %1502 = vmatpush1.msra.mxu0 0.0
        %1503 = vmatprep.subr.mxu0 0.0
        %1504 = vmatpush1.msra.mxu0 0.0
        %1505 = vmatprep.subr.mxu0 0.0
        %1506 = vmatpush1.msra.mxu0 0.0
        %1507 = vmatprep.subr.mxu0 0.0
        %1508 = vmatpush1.msra.mxu0 0.0
        %1509 = vmatprep.subr.mxu0 0.0
        %1510 = vmatpush1.msra.mxu0 0.0
        %1511 = vmatprep.mubr.f32.mxu0 0.0
        %1512 = vmatmul.mubr.f32.gmra.mrb[0].mxu0 %v1445
        %v1513 = vpop.f32.mrb[0].mxu0
        %v1514 = vadd.f32 0.0, %v1513
        %v1515 = vpop.f32.mrb[0].mxu0
        %1516 = vdwg.mxu0
        %v1517 = vld [vmem:[#allocation2 + $0x2] sm:$0x1]
        %v1518 = vld [vmem:[#allocation2 + $0xa] sm:$0x1]
        %v1519 = vld [vmem:[#allocation2 + $0x12] sm:$0x1]
        %v1520 = vld [vmem:[#allocation2 + $0x1a] sm:$0x1]
        %v1521 = vld [vmem:[#allocation2 + $0x22] sm:$0x1]
        %v1522 = vld [vmem:[#allocation2 + $0x2a] sm:$0x1]
        %v1523 = vld [vmem:[#allocation2 + $0x32] sm:$0x1]
        %v1524 = vld [vmem:[#allocation2 + $0x3a] sm:$0x1]
        %v1526 = vrot.slane %v1514, 1
        %v1527 = vrot.slane %v1514, 2
        %v1528 = vrot.slane %v1514, 3
        %v1529 = vrot.slane %v1514, 4
        %v1530 = vrot.slane %v1514, 5
        %v1531 = vrot.slane %v1514, 6
        %v1532 = vrot.slane %v1514, 7
        %v1541 = vadd.f32 %v1517, %v1514
        %v1542 = vadd.f32 %v1518, %v1526
        %v1543 = vadd.f32 %v1519, %v1527
        %v1544 = vadd.f32 %v1520, %v1528
        %v1545 = vadd.f32 %v1521, %v1529
        %v1546 = vadd.f32 %v1522, %v1530
        %v1547 = vadd.f32 %v1523, %v1531
        %v1548 = vadd.f32 %v1524, %v1532
        %1549 = vst.msk [vmem:[#allocation2 + $0x2] sm:$0x1] %vm1260, %v1541
        %1550 = vst.msk [vmem:[#allocation2 + $0xa] sm:$0x1] %vm1260, %v1542
        %1551 = vst.msk [vmem:[#allocation2 + $0x12] sm:$0x1] %vm1260, %v1543
        %1552 = vst.msk [vmem:[#allocation2 + $0x1a] sm:$0x1] %vm1260, %v1544
        %1553 = vst.msk [vmem:[#allocation2 + $0x22] sm:$0x1] %vm1260, %v1545
        %1554 = vst.msk [vmem:[#allocation2 + $0x2a] sm:$0x1] %vm1260, %v1546
        %1555 = vst.msk [vmem:[#allocation2 + $0x32] sm:$0x1] %vm1260, %v1547
        %1556 = vst.msk [vmem:[#allocation2 + $0x3a] sm:$0x1] %vm1260, %v1548
        %v1557 = vld [vmem:[%s271 + $0x3] sm:$0x1]
        %v1558 = vld [vmem:[%s271 + $0xb] sm:$0x1]
        %v1559 = vld [vmem:[%s271 + $0x13] sm:$0x1]
        %v1560 = vld [vmem:[%s271 + $0x1b] sm:$0x1]
        %v1561 = vld [vmem:[%s271 + $0x23] sm:$0x1]
        %v1562 = vld [vmem:[%s271 + $0x2b] sm:$0x1]
        %v1563 = vld [vmem:[%s271 + $0x33] sm:$0x1]
        %v1564 = vld [vmem:[%s271 + $0x3b] sm:$0x1]
        %v1573 = vrot.slane %v1558, 7
        %v1574 = vsel %vm1134, %v1573, %v1557
        %v1575 = vrot.slane %v1559, 6
        %v1576 = vsel %vm1137, %v1575, %v1574
        %v1577 = vrot.slane %v1560, 5
        %v1578 = vsel %vm1140, %v1577, %v1576
        %v1579 = vrot.slane %v1561, 4
        %v1580 = vsel %vm1143, %v1579, %v1578
        %v1581 = vrot.slane %v1562, 3
        %v1582 = vsel %vm1146, %v1581, %v1580
        %v1583 = vrot.slane %v1563, 2
        %v1584 = vsel %vm1149, %v1583, %v1582
        %v1585 = vrot.slane %v1564, 1
        %v1586 = vsel %vm1152, %v1585, %v1584
        %v1589 = vsel %vm331, %v515, 0
        %1591 = vmatprep.subr.mxu0 0.0
        %1592 = vmatpush1.msra.mxu0 %v1586
        %1593 = vmatprep.subr.mxu0 0.0
        %1594 = vmatpush1.msra.mxu0 0.0
        %1595 = vmatprep.subr.mxu0 0.0
        %1596 = vmatpush1.msra.mxu0 0.0
        %1597 = vmatprep.subr.mxu0 0.0
        %1598 = vmatpush1.msra.mxu0 0.0
        %1599 = vmatprep.subr.mxu0 0.0
        %1600 = vmatpush1.msra.mxu0 0.0
        %1601 = vmatprep.subr.mxu0 0.0
        %1602 = vmatpush1.msra.mxu0 0.0
        %1603 = vmatprep.subr.mxu0 0.0
        %1604 = vmatpush1.msra.mxu0 0.0
        %1605 = vmatprep.subr.mxu0 0.0
        %1606 = vmatpush1.msra.mxu0 0.0
        %1607 = vmatprep.subr.mxu0 0.0
        %1608 = vmatpush1.msra.mxu0 0.0
        %1609 = vmatprep.subr.mxu0 0.0
        %1610 = vmatpush1.msra.mxu0 0.0
        %1611 = vmatprep.subr.mxu0 0.0
        %1612 = vmatpush1.msra.mxu0 0.0
        %1613 = vmatprep.subr.mxu0 0.0
        %1614 = vmatpush1.msra.mxu0 0.0
        %1615 = vmatprep.subr.mxu0 0.0
        %1616 = vmatpush1.msra.mxu0 0.0
        %1617 = vmatprep.subr.mxu0 0.0
        %1618 = vmatpush1.msra.mxu0 0.0
        %1619 = vmatprep.subr.mxu0 0.0
        %1620 = vmatpush1.msra.mxu0 0.0
        %1621 = vmatprep.subr.mxu0 0.0
        %1622 = vmatpush1.msra.mxu0 0.0
        %1623 = vmatprep.subr.mxu0 0.0
        %1624 = vmatpush1.msra.mxu0 0.0
        %1625 = vmatprep.subr.mxu0 0.0
        %1626 = vmatpush1.msra.mxu0 0.0
        %1627 = vmatprep.subr.mxu0 0.0
        %1628 = vmatpush1.msra.mxu0 0.0
        %1629 = vmatprep.subr.mxu0 0.0
        %1630 = vmatpush1.msra.mxu0 0.0
        %1631 = vmatprep.subr.mxu0 0.0
        %1632 = vmatpush1.msra.mxu0 0.0
        %1633 = vmatprep.subr.mxu0 0.0
        %1634 = vmatpush1.msra.mxu0 0.0
        %1635 = vmatprep.subr.mxu0 0.0
        %1636 = vmatpush1.msra.mxu0 0.0
        %1637 = vmatprep.subr.mxu0 0.0
        %1638 = vmatpush1.msra.mxu0 0.0
        %1639 = vmatprep.subr.mxu0 0.0
        %1640 = vmatpush1.msra.mxu0 0.0
        %1641 = vmatprep.subr.mxu0 0.0
        %1642 = vmatpush1.msra.mxu0 0.0
        %1643 = vmatprep.subr.mxu0 0.0
        %1644 = vmatpush1.msra.mxu0 0.0
        %1645 = vmatprep.subr.mxu0 0.0
        %1646 = vmatpush1.msra.mxu0 0.0
        %1647 = vmatprep.subr.mxu0 0.0
        %1648 = vmatpush1.msra.mxu0 0.0
        %1649 = vmatprep.subr.mxu0 0.0
        %1650 = vmatpush1.msra.mxu0 0.0
        %1651 = vmatprep.subr.mxu0 0.0
        %1652 = vmatpush1.msra.mxu0 0.0
        %1653 = vmatprep.subr.mxu0 0.0
        %1654 = vmatpush1.msra.mxu0 0.0
        %1655 = vmatprep.mubr.f32.mxu0 0.0
        %1656 = vmatmul.mubr.f32.gmra.mrb[0].mxu0 %v1589
        %v1657 = vpop.f32.mrb[0].mxu0
        %v1658 = vadd.f32 0.0, %v1657
        %v1659 = vpop.f32.mrb[0].mxu0
        %1660 = vdwg.mxu0
        %v1661 = vld [vmem:[#allocation2 + $0x3] sm:$0x1]
        %v1662 = vld [vmem:[#allocation2 + $0xb] sm:$0x1]
        %v1663 = vld [vmem:[#allocation2 + $0x13] sm:$0x1]
        %v1664 = vld [vmem:[#allocation2 + $0x1b] sm:$0x1]
        %v1665 = vld [vmem:[#allocation2 + $0x23] sm:$0x1]
        %v1666 = vld [vmem:[#allocation2 + $0x2b] sm:$0x1]
        %v1667 = vld [vmem:[#allocation2 + $0x33] sm:$0x1]
        %v1668 = vld [vmem:[#allocation2 + $0x3b] sm:$0x1]
        %v1670 = vrot.slane %v1658, 1
        %v1671 = vrot.slane %v1658, 2
        %v1672 = vrot.slane %v1658, 3
        %v1673 = vrot.slane %v1658, 4
        %v1674 = vrot.slane %v1658, 5
        %v1675 = vrot.slane %v1658, 6
        %v1676 = vrot.slane %v1658, 7
        %v1685 = vadd.f32 %v1661, %v1658
        %v1686 = vadd.f32 %v1662, %v1670
        %v1687 = vadd.f32 %v1663, %v1671
        %v1688 = vadd.f32 %v1664, %v1672
        %v1689 = vadd.f32 %v1665, %v1673
        %v1690 = vadd.f32 %v1666, %v1674
        %v1691 = vadd.f32 %v1667, %v1675
        %v1692 = vadd.f32 %v1668, %v1676
        %1693 = vst.msk [vmem:[#allocation2 + $0x3] sm:$0x1] %vm1260, %v1685
        %1694 = vst.msk [vmem:[#allocation2 + $0xb] sm:$0x1] %vm1260, %v1686
        %1695 = vst.msk [vmem:[#allocation2 + $0x13] sm:$0x1] %vm1260, %v1687
        %1696 = vst.msk [vmem:[#allocation2 + $0x1b] sm:$0x1] %vm1260, %v1688
        %1697 = vst.msk [vmem:[#allocation2 + $0x23] sm:$0x1] %vm1260, %v1689
        %1698 = vst.msk [vmem:[#allocation2 + $0x2b] sm:$0x1] %vm1260, %v1690
        %1699 = vst.msk [vmem:[#allocation2 + $0x33] sm:$0x1] %vm1260, %v1691
        %1700 = vst.msk [vmem:[#allocation2 + $0x3b] sm:$0x1] %vm1260, %v1692
        %v1701 = vld [vmem:[%s271 + $0x4] sm:$0x1]
        %v1702 = vld [vmem:[%s271 + $0xc] sm:$0x1]
        %v1703 = vld [vmem:[%s271 + $0x14] sm:$0x1]
        %v1704 = vld [vmem:[%s271 + $0x1c] sm:$0x1]
        %v1705 = vld [vmem:[%s271 + $0x24] sm:$0x1]
        %v1706 = vld [vmem:[%s271 + $0x2c] sm:$0x1]
        %v1707 = vld [vmem:[%s271 + $0x34] sm:$0x1]
        %v1708 = vld [vmem:[%s271 + $0x3c] sm:$0x1]
        %v1717 = vrot.slane %v1702, 7
        %v1718 = vsel %vm1134, %v1717, %v1701
        %v1719 = vrot.slane %v1703, 6
        %v1720 = vsel %vm1137, %v1719, %v1718
        %v1721 = vrot.slane %v1704, 5
        %v1722 = vsel %vm1140, %v1721, %v1720
        %v1723 = vrot.slane %v1705, 4
        %v1724 = vsel %vm1143, %v1723, %v1722
        %v1725 = vrot.slane %v1706, 3
        %v1726 = vsel %vm1146, %v1725, %v1724
        %v1727 = vrot.slane %v1707, 2
        %v1728 = vsel %vm1149, %v1727, %v1726
        %v1729 = vrot.slane %v1708, 1
        %v1730 = vsel %vm1152, %v1729, %v1728
        %v1733 = vsel %vm331, %v517, 0
        %1735 = vmatprep.subr.mxu0 0.0
        %1736 = vmatpush1.msra.mxu0 %v1730
        %1737 = vmatprep.subr.mxu0 0.0
        %1738 = vmatpush1.msra.mxu0 0.0
        %1739 = vmatprep.subr.mxu0 0.0
        %1740 = vmatpush1.msra.mxu0 0.0
        %1741 = vmatprep.subr.mxu0 0.0
        %1742 = vmatpush1.msra.mxu0 0.0
        %1743 = vmatprep.subr.mxu0 0.0
        %1744 = vmatpush1.msra.mxu0 0.0
        %1745 = vmatprep.subr.mxu0 0.0
        %1746 = vmatpush1.msra.mxu0 0.0
        %1747 = vmatprep.subr.mxu0 0.0
        %1748 = vmatpush1.msra.mxu0 0.0
        %1749 = vmatprep.subr.mxu0 0.0
        %1750 = vmatpush1.msra.mxu0 0.0
        %1751 = vmatprep.subr.mxu0 0.0
        %1752 = vmatpush1.msra.mxu0 0.0
        %1753 = vmatprep.subr.mxu0 0.0
        %1754 = vmatpush1.msra.mxu0 0.0
        %1755 = vmatprep.subr.mxu0 0.0
        %1756 = vmatpush1.msra.mxu0 0.0
        %1757 = vmatprep.subr.mxu0 0.0
        %1758 = vmatpush1.msra.mxu0 0.0
        %1759 = vmatprep.subr.mxu0 0.0
        %1760 = vmatpush1.msra.mxu0 0.0
        %1761 = vmatprep.subr.mxu0 0.0
        %1762 = vmatpush1.msra.mxu0 0.0
        %1763 = vmatprep.subr.mxu0 0.0
        %1764 = vmatpush1.msra.mxu0 0.0
        %1765 = vmatprep.subr.mxu0 0.0
        %1766 = vmatpush1.msra.mxu0 0.0
        %1767 = vmatprep.subr.mxu0 0.0
        %1768 = vmatpush1.msra.mxu0 0.0
        %1769 = vmatprep.subr.mxu0 0.0
        %1770 = vmatpush1.msra.mxu0 0.0
        %1771 = vmatprep.subr.mxu0 0.0
        %1772 = vmatpush1.msra.mxu0 0.0
        %1773 = vmatprep.subr.mxu0 0.0
        %1774 = vmatpush1.msra.mxu0 0.0
        %1775 = vmatprep.subr.mxu0 0.0
        %1776 = vmatpush1.msra.mxu0 0.0
        %1777 = vmatprep.subr.mxu0 0.0
        %1778 = vmatpush1.msra.mxu0 0.0
        %1779 = vmatprep.subr.mxu0 0.0
        %1780 = vmatpush1.msra.mxu0 0.0
        %1781 = vmatprep.subr.mxu0 0.0
        %1782 = vmatpush1.msra.mxu0 0.0
        %1783 = vmatprep.subr.mxu0 0.0
        %1784 = vmatpush1.msra.mxu0 0.0
        %1785 = vmatprep.subr.mxu0 0.0
        %1786 = vmatpush1.msra.mxu0 0.0
        %1787 = vmatprep.subr.mxu0 0.0
        %1788 = vmatpush1.msra.mxu0 0.0
        %1789 = vmatprep.subr.mxu0 0.0
        %1790 = vmatpush1.msra.mxu0 0.0
        %1791 = vmatprep.subr.mxu0 0.0
        %1792 = vmatpush1.msra.mxu0 0.0
        %1793 = vmatprep.subr.mxu0 0.0
        %1794 = vmatpush1.msra.mxu0 0.0
        %1795 = vmatprep.subr.mxu0 0.0
        %1796 = vmatpush1.msra.mxu0 0.0
        %1797 = vmatprep.subr.mxu0 0.0
        %1798 = vmatpush1.msra.mxu0 0.0
        %1799 = vmatprep.mubr.f32.mxu0 0.0
        %1800 = vmatmul.mubr.f32.gmra.mrb[0].mxu0 %v1733
        %v1801 = vpop.f32.mrb[0].mxu0
        %v1802 = vadd.f32 0.0, %v1801
        %v1803 = vpop.f32.mrb[0].mxu0
        %1804 = vdwg.mxu0
        %v1805 = vld [vmem:[#allocation2 + $0x4] sm:$0x1]
        %v1806 = vld [vmem:[#allocation2 + $0xc] sm:$0x1]
        %v1807 = vld [vmem:[#allocation2 + $0x14] sm:$0x1]
        %v1808 = vld [vmem:[#allocation2 + $0x1c] sm:$0x1]
        %v1809 = vld [vmem:[#allocation2 + $0x24] sm:$0x1]
        %v1810 = vld [vmem:[#allocation2 + $0x2c] sm:$0x1]
        %v1811 = vld [vmem:[#allocation2 + $0x34] sm:$0x1]
        %v1812 = vld [vmem:[#allocation2 + $0x3c] sm:$0x1]
        %v1814 = vrot.slane %v1802, 1
        %v1815 = vrot.slane %v1802, 2
        %v1816 = vrot.slane %v1802, 3
        %v1817 = vrot.slane %v1802, 4
        %v1818 = vrot.slane %v1802, 5
        %v1819 = vrot.slane %v1802, 6
        %v1820 = vrot.slane %v1802, 7
        %v1829 = vadd.f32 %v1805, %v1802
        %v1830 = vadd.f32 %v1806, %v1814
        %v1831 = vadd.f32 %v1807, %v1815
        %v1832 = vadd.f32 %v1808, %v1816
        %v1833 = vadd.f32 %v1809, %v1817
        %v1834 = vadd.f32 %v1810, %v1818
        %v1835 = vadd.f32 %v1811, %v1819
        %v1836 = vadd.f32 %v1812, %v1820
        %1837 = vst.msk [vmem:[#allocation2 + $0x4] sm:$0x1] %vm1260, %v1829
        %1838 = vst.msk [vmem:[#allocation2 + $0xc] sm:$0x1] %vm1260, %v1830
        %1839 = vst.msk [vmem:[#allocation2 + $0x14] sm:$0x1] %vm1260, %v1831
        %1840 = vst.msk [vmem:[#allocation2 + $0x1c] sm:$0x1] %vm1260, %v1832
        %1841 = vst.msk [vmem:[#allocation2 + $0x24] sm:$0x1] %vm1260, %v1833
        %1842 = vst.msk [vmem:[#allocation2 + $0x2c] sm:$0x1] %vm1260, %v1834
        %1843 = vst.msk [vmem:[#allocation2 + $0x34] sm:$0x1] %vm1260, %v1835
        %1844 = vst.msk [vmem:[#allocation2 + $0x3c] sm:$0x1] %vm1260, %v1836
        %v1845 = vld [vmem:[%s271 + $0x5] sm:$0x1]
        %v1846 = vld [vmem:[%s271 + $0xd] sm:$0x1]
        %v1847 = vld [vmem:[%s271 + $0x15] sm:$0x1]
        %v1848 = vld [vmem:[%s271 + $0x1d] sm:$0x1]
        %v1849 = vld [vmem:[%s271 + $0x25] sm:$0x1]
        %v1850 = vld [vmem:[%s271 + $0x2d] sm:$0x1]
        %v1851 = vld [vmem:[%s271 + $0x35] sm:$0x1]
        %v1852 = vld [vmem:[%s271 + $0x3d] sm:$0x1]
        %v1861 = vrot.slane %v1846, 7
        %v1862 = vsel %vm1134, %v1861, %v1845
        %v1863 = vrot.slane %v1847, 6
        %v1864 = vsel %vm1137, %v1863, %v1862
        %v1865 = vrot.slane %v1848, 5
        %v1866 = vsel %vm1140, %v1865, %v1864
        %v1867 = vrot.slane %v1849, 4
        %v1868 = vsel %vm1143, %v1867, %v1866
        %v1869 = vrot.slane %v1850, 3
        %v1870 = vsel %vm1146, %v1869, %v1868
        %v1871 = vrot.slane %v1851, 2
        %v1872 = vsel %vm1149, %v1871, %v1870
        %v1873 = vrot.slane %v1852, 1
        %v1874 = vsel %vm1152, %v1873, %v1872
        %v1877 = vsel %vm331, %v519, 0
        %1879 = vmatprep.subr.mxu0 0.0
        %1880 = vmatpush1.msra.mxu0 %v1874
        %1881 = vmatprep.subr.mxu0 0.0
        %1882 = vmatpush1.msra.mxu0 0.0
        %1883 = vmatprep.subr.mxu0 0.0
        %1884 = vmatpush1.msra.mxu0 0.0
        %1885 = vmatprep.subr.mxu0 0.0
        %1886 = vmatpush1.msra.mxu0 0.0
        %1887 = vmatprep.subr.mxu0 0.0
        %1888 = vmatpush1.msra.mxu0 0.0
        %1889 = vmatprep.subr.mxu0 0.0
        %1890 = vmatpush1.msra.mxu0 0.0
        %1891 = vmatprep.subr.mxu0 0.0
        %1892 = vmatpush1.msra.mxu0 0.0
        %1893 = vmatprep.subr.mxu0 0.0
        %1894 = vmatpush1.msra.mxu0 0.0
        %1895 = vmatprep.subr.mxu0 0.0
        %1896 = vmatpush1.msra.mxu0 0.0
        %1897 = vmatprep.subr.mxu0 0.0
        %1898 = vmatpush1.msra.mxu0 0.0
        %1899 = vmatprep.subr.mxu0 0.0
        %1900 = vmatpush1.msra.mxu0 0.0
        %1901 = vmatprep.subr.mxu0 0.0
        %1902 = vmatpush1.msra.mxu0 0.0
        %1903 = vmatprep.subr.mxu0 0.0
        %1904 = vmatpush1.msra.mxu0 0.0
        %1905 = vmatprep.subr.mxu0 0.0
        %1906 = vmatpush1.msra.mxu0 0.0
        %1907 = vmatprep.subr.mxu0 0.0
        %1908 = vmatpush1.msra.mxu0 0.0
        %1909 = vmatprep.subr.mxu0 0.0
        %1910 = vmatpush1.msra.mxu0 0.0
        %1911 = vmatprep.subr.mxu0 0.0
        %1912 = vmatpush1.msra.mxu0 0.0
        %1913 = vmatprep.subr.mxu0 0.0
        %1914 = vmatpush1.msra.mxu0 0.0
        %1915 = vmatprep.subr.mxu0 0.0
        %1916 = vmatpush1.msra.mxu0 0.0
        %1917 = vmatprep.subr.mxu0 0.0
        %1918 = vmatpush1.msra.mxu0 0.0
        %1919 = vmatprep.subr.mxu0 0.0
        %1920 = vmatpush1.msra.mxu0 0.0
        %1921 = vmatprep.subr.mxu0 0.0
        %1922 = vmatpush1.msra.mxu0 0.0
        %1923 = vmatprep.subr.mxu0 0.0
        %1924 = vmatpush1.msra.mxu0 0.0
        %1925 = vmatprep.subr.mxu0 0.0
        %1926 = vmatpush1.msra.mxu0 0.0
        %1927 = vmatprep.subr.mxu0 0.0
        %1928 = vmatpush1.msra.mxu0 0.0
        %1929 = vmatprep.subr.mxu0 0.0
        %1930 = vmatpush1.msra.mxu0 0.0
        %1931 = vmatprep.subr.mxu0 0.0
        %1932 = vmatpush1.msra.mxu0 0.0
        %1933 = vmatprep.subr.mxu0 0.0
        %1934 = vmatpush1.msra.mxu0 0.0
        %1935 = vmatprep.subr.mxu0 0.0
        %1936 = vmatpush1.msra.mxu0 0.0
        %1937 = vmatprep.subr.mxu0 0.0
        %1938 = vmatpush1.msra.mxu0 0.0
        %1939 = vmatprep.subr.mxu0 0.0
        %1940 = vmatpush1.msra.mxu0 0.0
        %1941 = vmatprep.subr.mxu0 0.0
        %1942 = vmatpush1.msra.mxu0 0.0
        %1943 = vmatprep.mubr.f32.mxu0 0.0
        %1944 = vmatmul.mubr.f32.gmra.mrb[0].mxu0 %v1877
        %v1945 = vpop.f32.mrb[0].mxu0
        %v1946 = vadd.f32 0.0, %v1945
        %v1947 = vpop.f32.mrb[0].mxu0
        %1948 = vdwg.mxu0
        %v1949 = vld [vmem:[#allocation2 + $0x5] sm:$0x1]
        %v1950 = vld [vmem:[#allocation2 + $0xd] sm:$0x1]
        %v1951 = vld [vmem:[#allocation2 + $0x15] sm:$0x1]
        %v1952 = vld [vmem:[#allocation2 + $0x1d] sm:$0x1]
        %v1953 = vld [vmem:[#allocation2 + $0x25] sm:$0x1]
        %v1954 = vld [vmem:[#allocation2 + $0x2d] sm:$0x1]
        %v1955 = vld [vmem:[#allocation2 + $0x35] sm:$0x1]
        %v1956 = vld [vmem:[#allocation2 + $0x3d] sm:$0x1]
        %v1958 = vrot.slane %v1946, 1
        %v1959 = vrot.slane %v1946, 2
        %v1960 = vrot.slane %v1946, 3
        %v1961 = vrot.slane %v1946, 4
        %v1962 = vrot.slane %v1946, 5
        %v1963 = vrot.slane %v1946, 6
        %v1964 = vrot.slane %v1946, 7
        %v1973 = vadd.f32 %v1949, %v1946
        %v1974 = vadd.f32 %v1950, %v1958
        %v1975 = vadd.f32 %v1951, %v1959
        %v1976 = vadd.f32 %v1952, %v1960
        %v1977 = vadd.f32 %v1953, %v1961
        %v1978 = vadd.f32 %v1954, %v1962
        %v1979 = vadd.f32 %v1955, %v1963
        %v1980 = vadd.f32 %v1956, %v1964
        %1981 = vst.msk [vmem:[#allocation2 + $0x5] sm:$0x1] %vm1260, %v1973
        %1982 = vst.msk [vmem:[#allocation2 + $0xd] sm:$0x1] %vm1260, %v1974
        %1983 = vst.msk [vmem:[#allocation2 + $0x15] sm:$0x1] %vm1260, %v1975
        %1984 = vst.msk [vmem:[#allocation2 + $0x1d] sm:$0x1] %vm1260, %v1976
        %1985 = vst.msk [vmem:[#allocation2 + $0x25] sm:$0x1] %vm1260, %v1977
        %1986 = vst.msk [vmem:[#allocation2 + $0x2d] sm:$0x1] %vm1260, %v1978
        %1987 = vst.msk [vmem:[#allocation2 + $0x35] sm:$0x1] %vm1260, %v1979
        %1988 = vst.msk [vmem:[#allocation2 + $0x3d] sm:$0x1] %vm1260, %v1980
        %v1989 = vld [vmem:[%s271 + $0x6] sm:$0x1]
        %v1990 = vld [vmem:[%s271 + $0xe] sm:$0x1]
        %v1991 = vld [vmem:[%s271 + $0x16] sm:$0x1]
        %v1992 = vld [vmem:[%s271 + $0x1e] sm:$0x1]
        %v1993 = vld [vmem:[%s271 + $0x26] sm:$0x1]
        %v1994 = vld [vmem:[%s271 + $0x2e] sm:$0x1]
        %v1995 = vld [vmem:[%s271 + $0x36] sm:$0x1]
        %v1996 = vld [vmem:[%s271 + $0x3e] sm:$0x1]
        %v2005 = vrot.slane %v1990, 7
        %v2006 = vsel %vm1134, %v2005, %v1989
        %v2007 = vrot.slane %v1991, 6
        %v2008 = vsel %vm1137, %v2007, %v2006
        %v2009 = vrot.slane %v1992, 5
        %v2010 = vsel %vm1140, %v2009, %v2008
        %v2011 = vrot.slane %v1993, 4
        %v2012 = vsel %vm1143, %v2011, %v2010
        %v2013 = vrot.slane %v1994, 3
        %v2014 = vsel %vm1146, %v2013, %v2012
        %v2015 = vrot.slane %v1995, 2
        %v2016 = vsel %vm1149, %v2015, %v2014
        %v2017 = vrot.slane %v1996, 1
        %v2018 = vsel %vm1152, %v2017, %v2016
        %v2021 = vsel %vm331, %v521, 0
        %2023 = vmatprep.subr.mxu0 0.0
        %2024 = vmatpush1.msra.mxu0 %v2018
        %2025 = vmatprep.subr.mxu0 0.0
        %2026 = vmatpush1.msra.mxu0 0.0
        %2027 = vmatprep.subr.mxu0 0.0
        %2028 = vmatpush1.msra.mxu0 0.0
        %2029 = vmatprep.subr.mxu0 0.0
        %2030 = vmatpush1.msra.mxu0 0.0
        %2031 = vmatprep.subr.mxu0 0.0
        %2032 = vmatpush1.msra.mxu0 0.0
        %2033 = vmatprep.subr.mxu0 0.0
        %2034 = vmatpush1.msra.mxu0 0.0
        %2035 = vmatprep.subr.mxu0 0.0
        %2036 = vmatpush1.msra.mxu0 0.0
        %2037 = vmatprep.subr.mxu0 0.0
        %2038 = vmatpush1.msra.mxu0 0.0
        %2039 = vmatprep.subr.mxu0 0.0
        %2040 = vmatpush1.msra.mxu0 0.0
        %2041 = vmatprep.subr.mxu0 0.0
        %2042 = vmatpush1.msra.mxu0 0.0
        %2043 = vmatprep.subr.mxu0 0.0
        %2044 = vmatpush1.msra.mxu0 0.0
        %2045 = vmatprep.subr.mxu0 0.0
        %2046 = vmatpush1.msra.mxu0 0.0
        %2047 = vmatprep.subr.mxu0 0.0
        %2048 = vmatpush1.msra.mxu0 0.0
        %2049 = vmatprep.subr.mxu0 0.0
        %2050 = vmatpush1.msra.mxu0 0.0
        %2051 = vmatprep.subr.mxu0 0.0
        %2052 = vmatpush1.msra.mxu0 0.0
        %2053 = vmatprep.subr.mxu0 0.0
        %2054 = vmatpush1.msra.mxu0 0.0
        %2055 = vmatprep.subr.mxu0 0.0
        %2056 = vmatpush1.msra.mxu0 0.0
        %2057 = vmatprep.subr.mxu0 0.0
        %2058 = vmatpush1.msra.mxu0 0.0
        %2059 = vmatprep.subr.mxu0 0.0
        %2060 = vmatpush1.msra.mxu0 0.0
        %2061 = vmatprep.subr.mxu0 0.0
        %2062 = vmatpush1.msra.mxu0 0.0
        %2063 = vmatprep.subr.mxu0 0.0
        %2064 = vmatpush1.msra.mxu0 0.0
        %2065 = vmatprep.subr.mxu0 0.0
        %2066 = vmatpush1.msra.mxu0 0.0
        %2067 = vmatprep.subr.mxu0 0.0
        %2068 = vmatpush1.msra.mxu0 0.0
        %2069 = vmatprep.subr.mxu0 0.0
        %2070 = vmatpush1.msra.mxu0 0.0
        %2071 = vmatprep.subr.mxu0 0.0
        %2072 = vmatpush1.msra.mxu0 0.0
        %2073 = vmatprep.subr.mxu0 0.0
        %2074 = vmatpush1.msra.mxu0 0.0
        %2075 = vmatprep.subr.mxu0 0.0
        %2076 = vmatpush1.msra.mxu0 0.0
        %2077 = vmatprep.subr.mxu0 0.0
        %2078 = vmatpush1.msra.mxu0 0.0
        %2079 = vmatprep.subr.mxu0 0.0
        %2080 = vmatpush1.msra.mxu0 0.0
        %2081 = vmatprep.subr.mxu0 0.0
        %2082 = vmatpush1.msra.mxu0 0.0
        %2083 = vmatprep.subr.mxu0 0.0
        %2084 = vmatpush1.msra.mxu0 0.0
        %2085 = vmatprep.subr.mxu0 0.0
        %2086 = vmatpush1.msra.mxu0 0.0
        %2087 = vmatprep.mubr.f32.mxu0 0.0
        %2088 = vmatmul.mubr.f32.gmra.mrb[0].mxu0 %v2021
        %v2089 = vpop.f32.mrb[0].mxu0
        %v2090 = vadd.f32 0.0, %v2089
        %v2091 = vpop.f32.mrb[0].mxu0
        %2092 = vdwg.mxu0
        %v2093 = vld [vmem:[#allocation2 + $0x6] sm:$0x1]
        %v2094 = vld [vmem:[#allocation2 + $0xe] sm:$0x1]
        %v2095 = vld [vmem:[#allocation2 + $0x16] sm:$0x1]
        %v2096 = vld [vmem:[#allocation2 + $0x1e] sm:$0x1]
        %v2097 = vld [vmem:[#allocation2 + $0x26] sm:$0x1]
        %v2098 = vld [vmem:[#allocation2 + $0x2e] sm:$0x1]
        %v2099 = vld [vmem:[#allocation2 + $0x36] sm:$0x1]
        %v2100 = vld [vmem:[#allocation2 + $0x3e] sm:$0x1]
        %v2102 = vrot.slane %v2090, 1
        %v2103 = vrot.slane %v2090, 2
        %v2104 = vrot.slane %v2090, 3
        %v2105 = vrot.slane %v2090, 4
        %v2106 = vrot.slane %v2090, 5
        %v2107 = vrot.slane %v2090, 6
        %v2108 = vrot.slane %v2090, 7
        %v2117 = vadd.f32 %v2093, %v2090
        %v2118 = vadd.f32 %v2094, %v2102
        %v2119 = vadd.f32 %v2095, %v2103
        %v2120 = vadd.f32 %v2096, %v2104
        %v2121 = vadd.f32 %v2097, %v2105
        %v2122 = vadd.f32 %v2098, %v2106
        %v2123 = vadd.f32 %v2099, %v2107
        %v2124 = vadd.f32 %v2100, %v2108
        %2125 = vst.msk [vmem:[#allocation2 + $0x6] sm:$0x1] %vm1260, %v2117
        %2126 = vst.msk [vmem:[#allocation2 + $0xe] sm:$0x1] %vm1260, %v2118
        %2127 = vst.msk [vmem:[#allocation2 + $0x16] sm:$0x1] %vm1260, %v2119
        %2128 = vst.msk [vmem:[#allocation2 + $0x1e] sm:$0x1] %vm1260, %v2120
        %2129 = vst.msk [vmem:[#allocation2 + $0x26] sm:$0x1] %vm1260, %v2121
        %2130 = vst.msk [vmem:[#allocation2 + $0x2e] sm:$0x1] %vm1260, %v2122
        %2131 = vst.msk [vmem:[#allocation2 + $0x36] sm:$0x1] %vm1260, %v2123
        %2132 = vst.msk [vmem:[#allocation2 + $0x3e] sm:$0x1] %vm1260, %v2124
        %v2133 = vld [vmem:[%s271 + $0x7] sm:$0x1]
        %v2134 = vld [vmem:[%s271 + $0xf] sm:$0x1]
        %v2135 = vld [vmem:[%s271 + $0x17] sm:$0x1]
        %v2136 = vld [vmem:[%s271 + $0x1f] sm:$0x1]
        %v2137 = vld [vmem:[%s271 + $0x27] sm:$0x1]
        %v2138 = vld [vmem:[%s271 + $0x2f] sm:$0x1]
        %v2139 = vld [vmem:[%s271 + $0x37] sm:$0x1]
        %v2140 = vld [vmem:[%s271 + $0x3f] sm:$0x1]
        %v2149 = vrot.slane %v2134, 7
        %v2150 = vsel %vm1134, %v2149, %v2133
        %v2151 = vrot.slane %v2135, 6
        %v2152 = vsel %vm1137, %v2151, %v2150
        %v2153 = vrot.slane %v2136, 5
        %v2154 = vsel %vm1140, %v2153, %v2152
        %v2155 = vrot.slane %v2137, 4
        %v2156 = vsel %vm1143, %v2155, %v2154
        %v2157 = vrot.slane %v2138, 3
        %v2158 = vsel %vm1146, %v2157, %v2156
        %v2159 = vrot.slane %v2139, 2
        %v2160 = vsel %vm1149, %v2159, %v2158
        %v2161 = vrot.slane %v2140, 1
        %v2162 = vsel %vm1152, %v2161, %v2160
        %v2165 = vsel %vm331, %v523, 0
        %2167 = vmatprep.subr.mxu0 0.0
        %2168 = vmatpush1.msra.mxu0 %v2162
        %2169 = vmatprep.subr.mxu0 0.0
        %2170 = vmatpush1.msra.mxu0 0.0
        %2171 = vmatprep.subr.mxu0 0.0
        %2172 = vmatpush1.msra.mxu0 0.0
        %2173 = vmatprep.subr.mxu0 0.0
        %2174 = vmatpush1.msra.mxu0 0.0
        %2175 = vmatprep.subr.mxu0 0.0
        %2176 = vmatpush1.msra.mxu0 0.0
        %2177 = vmatprep.subr.mxu0 0.0
        %2178 = vmatpush1.msra.mxu0 0.0
        %2179 = vmatprep.subr.mxu0 0.0
        %2180 = vmatpush1.msra.mxu0 0.0
        %2181 = vmatprep.subr.mxu0 0.0
        %2182 = vmatpush1.msra.mxu0 0.0
        %2183 = vmatprep.subr.mxu0 0.0
        %2184 = vmatpush1.msra.mxu0 0.0
        %2185 = vmatprep.subr.mxu0 0.0
        %2186 = vmatpush1.msra.mxu0 0.0
        %2187 = vmatprep.subr.mxu0 0.0
        %2188 = vmatpush1.msra.mxu0 0.0
        %2189 = vmatprep.subr.mxu0 0.0
        %2190 = vmatpush1.msra.mxu0 0.0
        %2191 = vmatprep.subr.mxu0 0.0
        %2192 = vmatpush1.msra.mxu0 0.0
        %2193 = vmatprep.subr.mxu0 0.0
        %2194 = vmatpush1.msra.mxu0 0.0
        %2195 = vmatprep.subr.mxu0 0.0
        %2196 = vmatpush1.msra.mxu0 0.0
        %2197 = vmatprep.subr.mxu0 0.0
        %2198 = vmatpush1.msra.mxu0 0.0
        %2199 = vmatprep.subr.mxu0 0.0
        %2200 = vmatpush1.msra.mxu0 0.0
        %2201 = vmatprep.subr.mxu0 0.0
        %2202 = vmatpush1.msra.mxu0 0.0
        %2203 = vmatprep.subr.mxu0 0.0
        %2204 = vmatpush1.msra.mxu0 0.0
        %2205 = vmatprep.subr.mxu0 0.0
        %2206 = vmatpush1.msra.mxu0 0.0
        %2207 = vmatprep.subr.mxu0 0.0
        %2208 = vmatpush1.msra.mxu0 0.0
        %2209 = vmatprep.subr.mxu0 0.0
        %2210 = vmatpush1.msra.mxu0 0.0
        %2211 = vmatprep.subr.mxu0 0.0
        %2212 = vmatpush1.msra.mxu0 0.0
        %2213 = vmatprep.subr.mxu0 0.0
        %2214 = vmatpush1.msra.mxu0 0.0
        %2215 = vmatprep.subr.mxu0 0.0
        %2216 = vmatpush1.msra.mxu0 0.0
        %2217 = vmatprep.subr.mxu0 0.0
        %2218 = vmatpush1.msra.mxu0 0.0
        %2219 = vmatprep.subr.mxu0 0.0
        %2220 = vmatpush1.msra.mxu0 0.0
        %2221 = vmatprep.subr.mxu0 0.0
        %2222 = vmatpush1.msra.mxu0 0.0
        %2223 = vmatprep.subr.mxu0 0.0
        %2224 = vmatpush1.msra.mxu0 0.0
        %2225 = vmatprep.subr.mxu0 0.0
        %2226 = vmatpush1.msra.mxu0 0.0
        %2227 = vmatprep.subr.mxu0 0.0
        %2228 = vmatpush1.msra.mxu0 0.0
        %2229 = vmatprep.subr.mxu0 0.0
        %2230 = vmatpush1.msra.mxu0 0.0
        %2231 = vmatprep.mubr.f32.mxu0 0.0
        %2232 = vmatmul.mubr.f32.gmra.mrb[0].mxu0 %v2165
        %v2233 = vpop.f32.mrb[0].mxu0
        %v2234 = vadd.f32 0.0, %v2233
        %v2235 = vpop.f32.mrb[0].mxu0
        %2236 = vdwg.mxu0
        %v2237 = vld [vmem:[#allocation2 + $0x7] sm:$0x1]
        %v2238 = vld [vmem:[#allocation2 + $0xf] sm:$0x1]
        %v2239 = vld [vmem:[#allocation2 + $0x17] sm:$0x1]
        %v2240 = vld [vmem:[#allocation2 + $0x1f] sm:$0x1]
        %v2241 = vld [vmem:[#allocation2 + $0x27] sm:$0x1]
        %v2242 = vld [vmem:[#allocation2 + $0x2f] sm:$0x1]
        %v2243 = vld [vmem:[#allocation2 + $0x37] sm:$0x1]
        %v2244 = vld [vmem:[#allocation2 + $0x3f] sm:$0x1]
        %v2246 = vrot.slane %v2234, 1
        %v2247 = vrot.slane %v2234, 2
        %v2248 = vrot.slane %v2234, 3
        %v2249 = vrot.slane %v2234, 4
        %v2250 = vrot.slane %v2234, 5
        %v2251 = vrot.slane %v2234, 6
        %v2252 = vrot.slane %v2234, 7
        %v2261 = vadd.f32 %v2237, %v2234
        %v2262 = vadd.f32 %v2238, %v2246
        %v2263 = vadd.f32 %v2239, %v2247
        %v2264 = vadd.f32 %v2240, %v2248
        %v2265 = vadd.f32 %v2241, %v2249
        %v2266 = vadd.f32 %v2242, %v2250
        %v2267 = vadd.f32 %v2243, %v2251
        %v2268 = vadd.f32 %v2244, %v2252
        %2269 = vst.msk [vmem:[#allocation2 + $0x7] sm:$0x1] %vm1260, %v2261
        %2270 = vst.msk [vmem:[#allocation2 + $0xf] sm:$0x1] %vm1260, %v2262
        %2271 = vst.msk [vmem:[#allocation2 + $0x17] sm:$0x1] %vm1260, %v2263
        %2272 = vst.msk [vmem:[#allocation2 + $0x1f] sm:$0x1] %vm1260, %v2264
        %2273 = vst.msk [vmem:[#allocation2 + $0x27] sm:$0x1] %vm1260, %v2265
        %2274 = vst.msk [vmem:[#allocation2 + $0x2f] sm:$0x1] %vm1260, %v2266
        %2275 = vst.msk [vmem:[#allocation2 + $0x37] sm:$0x1] %vm1260, %v2267
        %2276 = vst.msk [vmem:[#allocation2 + $0x3f] sm:$0x1] %vm1260, %v2268
        %v2277 = vld [vmem:[#allocation2] sm:$0xff]
        %v2278 = vld [vmem:[#allocation2 + $0x8] sm:$0xff]
        %v2279 = vld [vmem:[#allocation2 + $0x10] sm:$0xff]
        %v2280 = vld [vmem:[#allocation2 + $0x18] sm:$0xff]
        %v2281 = vld [vmem:[#allocation2 + $0x20] sm:$0xff]
        %v2282 = vld [vmem:[#allocation2 + $0x28] sm:$0xff]
        %v2283 = vld [vmem:[#allocation2 + $0x30] sm:$0xff]
        %v2284 = vld [vmem:[#allocation2 + $0x38] sm:$0xff]
        %2285 = vst.msk [vmem:[%s305] sm:$0xff] %vm1108, %v2277
        %2286 = vst.msk [vmem:[%s305 + $0x8] sm:$0xff] %vm1108, %v2278
        %2287 = vst.msk [vmem:[%s305 + $0x10] sm:$0xff] %vm1108, %v2279
        %2288 = vst.msk [vmem:[%s305 + $0x18] sm:$0xff] %vm1108, %v2280
        %2289 = vst.msk [vmem:[%s305 + $0x20] sm:$0xff] %vm1108, %v2281
        %2290 = vst.msk [vmem:[%s305 + $0x28] sm:$0xff] %vm1108, %v2282
        %2291 = vst.msk [vmem:[%s305 + $0x30] sm:$0xff] %vm1108, %v2283
        %2292 = vst.msk [vmem:[%s305 + $0x38] sm:$0xff] %vm1108, %v2284
        %s2293 = sand.u32 %s132, 1
        %s2294 = scalar_lea.sflag [#allocation5], %s2293
        %s2295 = sand.u32 %s132, 1
        %s2296 = smul.addr %s2295, 64
        %s2297 = scalar_lea.vmem [#allocation11], %s2296
        // Predicated region
        $region53: #{tpu_custom_call.1} parent=35 // pred_check
          %p2298 = pneg %p142
        $region54: #{tpu_custom_call.1} parent=35 // pred_check_branch
          %2300 = sbr.rel (%p2298) target = $region56
        $region55: #{tpu_custom_call.1} parent=35 // pred_region
          %s2302 = ssub.s32 1024, 1024
          %2303 = vsyncadd %s2294, %s2302
          %s2304 = smul.addr %s25, 8
          %s2305 = smul.addr %s2304, 128
          %s2306 = scalar_lea.hbm %s4, %s2305
          %s2307 = sshll.u32 %s2297, 4
          %s2308 = int_to_ptr.vmem [resolvable:$true] %s2307
          %2313 = dma.vmem_to_hbm [thread:$0]  %s2308, 1024, %s2306, %s2294, 128, 128, 8
        $region56: #{tpu_custom_call.1} parent=35 // pred_fallthru
          _
      $region36: #{tpu_custom_call.1} parent=5 // pred_fallthru
        _
      %p2314 = scmp.le.s32.totalorder 2, %s20
      // Predicated region
      $region57: #{tpu_custom_call.1} parent=5 // pred_check
        %p2315 = pneg %p2314
      $region58: #{tpu_custom_call.1} parent=5 // pred_check_branch
        %2317 = sbr.rel (%p2315) target = $region60
      $region59: #{tpu_custom_call.1} parent=5 // pred_region
        %s2318 = ssub.s32 %s20, 2
        // Predicated region
        $region61: #{tpu_custom_call.1} parent=59 // pred_check
          %p2319 = pneg %p148
        $region62: #{tpu_custom_call.1} parent=59 // pred_check_branch
          %2321 = sbr.rel (%p2319) target = $region64
        $region63: #{tpu_custom_call.1} parent=59 // pred_region
          %s2322 = sand.u32 %s133, 1
          %s2323 = scalar_lea.sflag [#allocation5], %s2322
          %s2324 = sand.u32 %s133, 1
          %s2325 = smul.addr %s2324, 64
          %s2326 = scalar_lea.vmem [#allocation11], %s2325
          %2327 = dma.done %s2323, 1024
        $region64: #{tpu_custom_call.1} parent=59 // pred_fallthru
          _
      $region60: #{tpu_custom_call.1} parent=5 // pred_fallthru
        _
    $region6: #{tpu_custom_call.1} parent=1 // loop_footer
      %s24 = sadd.s32 1, %s20
    $region7: #{tpu_custom_call.1} parent=1 // loop_footer_branch
      %19 = sbr.rel target = $region3
    $region8: #{tpu_custom_call.1} parent=1 // loop_exit
      _
    %2328 = vsyncpa [#allocation4], 1
    %s2329 = scalar_lea.sflag [#allocation4], 1
    %2330 = vsyncpa %s2329, 1
    %2331 = vsyncpa [#allocation7], 1
    %s2332 = scalar_lea.sflag [#allocation7], 1
    %2333 = vsyncpa %s2332, 1
    %2334 = vsyncpa [#allocation10], 1
    %s2335 = scalar_lea.sflag [#allocation10], 1
    %2336 = vsyncpa %s2335, 1
    %2337 = vsyncpa [#allocation5], 1
    %s2338 = scalar_lea.sflag [#allocation5], 1
    %2339 = vsyncpa %s2338, 1

</llo_original>
